<compile_context>
chip_gen: v6e
topology: v6e:2x2x1
jax: 0.10.0
libtpu: 0.0.40
codegen_flags: <defaults>
</compile_context>

<pallas_src>
import functools

import jax
import jax.numpy as jnp
from jax.experimental import pallas as pl
from jax.experimental.pallas import tpu as pltpu


# ---------------------------------------------------------------------------
# Kernel 1: latent mapping network (PixelNorm + 8-layer MLP) -> packed style (N, 2, c)
# ---------------------------------------------------------------------------
def _mapping_kernel(z_ref, wh_ref, bh_ref, wo_ref, bo_ref, style_ref, h_ref, *,
                    epsilon, w_mul, b_mul, neg_slope, c, n_hidden):
    l = pl.program_id(0)

    @pl.when(l == 0)
    def _():
        # PixelNormLayer: x * rsqrt(mean(x^2, dim=1) + eps) over the feature axis.
        z = z_ref[...].astype(jnp.float32)
        h_ref[...] = z * jax.lax.rsqrt(jnp.mean(z * z, axis=1, keepdims=True) + epsilon)

    # EqualizedLinear layer l: weight stored bf16 in HBM (halves weight DMA),
    # upcast in-register; x @ (W * w_mul) + b * b_mul with w_mul folded as a post-scale.
    w = wh_ref[0].astype(jnp.float32)                         # (512, 512)
    b = bh_ref[0].astype(jnp.float32)                         # (1, 512)
    h = jnp.dot(h_ref[...], w, preferred_element_type=jnp.float32) * w_mul + b * b_mul
    h_ref[...] = jnp.where(h >= 0, h, neg_slope * h)          # LeakyReLU(0.2)

    @pl.when(l == n_hidden - 1)
    def _():
        # Final EqualizedLinear (512 -> 2c) + LeakyReLU (end_with_act=True), then pack
        # the style as (N, 2, c): [:, 0] = z_mean, [:, 1] = z_std.
        wo = wo_ref[...].astype(jnp.float32)                  # (512, 2c)
        out = (jnp.dot(h_ref[...], wo, preferred_element_type=jnp.float32) * w_mul
               + bo_ref[...].astype(jnp.float32) * b_mul)
        out = jnp.where(out >= 0, out, neg_slope * out)
        style_ref[:, 0:1, :] = out[:, :c][:, None, :]
        style_ref[:, 1:2, :] = out[:, c:][:, None, :]


# ---------------------------------------------------------------------------
# Kernel 2: AdaIN modulation (HBM-bound elementwise), tiled over (image, patch tiles)
# ---------------------------------------------------------------------------
def _modulate_kernel(x_ref, style_ref, o_ref):
    # x_ref: (1, TP, C) feature tile of ONE image; style_ref: (k, 2, C) styles of the k
    # latents mapped to this image; o_ref: (k, TP, C) -> repeat_interleave done by the
    # widened output block, x is read from HBM once per image (not once per latent).
    x = x_ref[...].astype(jnp.float32)                        # (1, TP, C)
    style = style_ref[...].astype(jnp.float32)                # (k, 2, C)
    zm = style[:, 0:1, :]                                     # (k, 1, C)
    zs = style[:, 1:2, :]                                     # (k, 1, C)
    o_ref[...] = (zm + x * (1.0 + zs)).astype(o_ref.dtype)


def _round_up(v, m):
    return (v + m - 1) // m * m


def _choose_patch_tile(num_patches, channels, k, x_itemsize, out_itemsize, *,
                       target_out_bytes=4 << 20, vmem_budget_bytes=12 << 20,
                       need_patch_parallel=False):
    """Patch rows per grid step.

    Sized so the output block is ~target_out_bytes (big blocks keep an elementwise
    kernel near the HBM roofline) while the double-buffered x/out streams stay inside
    a VMEM budget that is safe on v7x (32 MiB scoped default / 64 MiB physical) as
    well as v5e/v6e. Sublane (x8) aligned unless it covers all patches.  NOTE: for best
    store throughput `channels` should be a multiple of 128 (lane-dense output).
    """
    if num_patches <= 8:
        return num_patches
    out_row = k * channels * out_itemsize                     # bytes/patch-row in out block
    x_row = channels * x_itemsize                             # bytes/patch-row in x block
    pipeline_row = 2 * (out_row + x_row)                      # double-buffered streams
    tp = min(num_patches,
             max(8, target_out_bytes // max(1, out_row)),
             max(8, vmem_budget_bytes // max(1, pipeline_row)))
    if need_patch_parallel and num_patches >= 16:
        # Keep >=2 grid steps on a parallel axis so both v7x TensorCores are fed
        # even when the image batch is 1.
        tp = min(tp, _round_up(pl.cdiv(num_patches, 2), 8))
    if tp < num_patches:
        tp = max(8, (tp // 8) * 8)
    return tp


def mapping_network(z, w_hidden, b_hidden, w_out, b_out, *, c, epsilon=1e-8,
                    gain=2.0 ** 0.5, lrmul=0.01, neg_slope=0.2,
                    param_dtype=jnp.bfloat16):
    """PixelNorm(z) -> 8-layer equalized-lr MLP -> packed style (N, 2, c)."""
    n, zdim = z.shape
    n_hidden = w_hidden.shape[0]
    assert n_hidden >= 1
    assert w_out.shape == (zdim, 2 * c)
    w_mul = gain * (zdim ** -0.5) * lrmul       # in_dim == 512 for every layer
    b_mul = lrmul

    n_pad = _round_up(n, 8)                     # sublane-align the MXU M dim
    z_p = jnp.pad(z, ((0, n_pad - n), (0, 0))) if n_pad != n else z

    # The mapping stage is weight-DMA bound at these batch sizes: store the big
    # weights bf16 (half the HBM->VMEM bytes), keep biases / math f32.
    wh = w_hidden.astype(param_dtype)
    wo = w_out.astype(param_dtype)
    bh = b_hidden.reshape(n_hidden, 1, zdim).astype(jnp.float32)
    bo = b_out.reshape(1, 2 * c).astype(jnp.float32)

    kern = functools.partial(
        _mapping_kernel, epsilon=float(epsilon), w_mul=float(w_mul),
        b_mul=float(b_mul), neg_slope=float(neg_slope), c=int(c),
        n_hidden=int(n_hidden))

    style = pl.pallas_call(
        kern,
        out_shape=jax.ShapeDtypeStruct((n_pad, 2, c), jnp.float32),
        grid=(n_hidden,),
        in_specs=[
            pl.BlockSpec((n_pad, zdim), lambda l: (0, 0)),        # z: fetched once
            pl.BlockSpec((1, zdim, zdim), lambda l: (l, 0, 0)),   # per-layer weight (streamed)
            pl.BlockSpec((1, 1, zdim), lambda l: (l, 0, 0)),      # per-layer bias
            pl.BlockSpec((zdim, 2 * c), lambda l: (0, 0)),        # out-layer weight (fetched once)
            pl.BlockSpec((1, 2 * c), lambda l: (0, 0)),           # out-layer bias
        ],
        out_specs=pl.BlockSpec((n_pad, 2, c), lambda l: (0, 0, 0)),  # written at last step
        scratch_shapes=[pltpu.VMEM((n_pad, zdim), jnp.float32)],     # h carried across layers
        compiler_params=pltpu.CompilerParams(dimension_semantics=("arbitrary",)),
    )(z_p, wh, bh, wo, bo)
    return style[:n]


def adain_modulate(x, style, *, out_dtype=None):
    """out[n] = style[n,0] + x[n // k] * (1 + style[n,1]), broadcast over patches.

    x: (BS_X, NP, C) image tokens; style: (N, 2, C) packed (z_mean, z_std), N = k*BS_X.
    """
    n, two, c = style.shape
    assert two == 2
    bs_x, num_patches, cx = x.shape
    assert cx == c, "channel mismatch between x and the mapped style"
    assert n % bs_x == 0, "latent batch must be an integer multiple of the image batch"
    k = n // bs_x

    if out_dtype is None:
        out_dtype = jnp.result_type(x.dtype, style.dtype)     # torch promotion semantics

    tp = _choose_patch_tile(num_patches, c, k,
                            jnp.dtype(x.dtype).itemsize, jnp.dtype(out_dtype).itemsize,
                            need_patch_parallel=(bs_x < 2))
    grid = (bs_x, pl.cdiv(num_patches, tp))

    return pl.pallas_call(
        _modulate_kernel,
        out_shape=jax.ShapeDtypeStruct((n, num_patches, c), out_dtype),
        grid=grid,
        in_specs=[
            # x: one tile per (image, patch-tile) step -> read from HBM exactly once.
            pl.BlockSpec((1, tp, c), lambda i, p: (i, p, 0)),
            # packed styles of the k latents of image i (repeat_interleave order).
            pl.BlockSpec((k, 2, c), lambda i, p: (i, 0, 0)),
        ],
        # widened output block writes all k repeated outputs of this x tile at once.
        out_specs=pl.BlockSpec((k, tp, c), lambda i, p: (i, p, 0)),
        compiler_params=pltpu.CompilerParams(
            dimension_semantics=("parallel", "parallel"),
            vmem_limit_bytes=32 * 1024 * 1024),
    )(x, style)


def adain_forward(x, z, w_hidden, b_hidden, w_out, b_out, *, c, epsilon=1e-8,
                  param_dtype=jnp.bfloat16, out_dtype=None):
    """Full AdaIN.forward: x (BS_X, NP, C) image tokens, z (N, 512) latents."""
    style = mapping_network(z, w_hidden, b_hidden, w_out, b_out, c=c,
                            epsilon=epsilon, param_dtype=param_dtype)
    return adain_modulate(x, style, out_dtype=out_dtype)


# ---------------------------------------------------------------------------
# Pure-JAX references mirroring the PyTorch module
# ---------------------------------------------------------------------------
def mapping_ref(z, w_hidden, b_hidden, w_out, b_out, *, c, epsilon=1e-8,
                gain=2.0 ** 0.5, lrmul=0.01, neg_slope=0.2, param_dtype=jnp.float32):
    w_mul = gain * (z.shape[1] ** -0.5) * lrmul
    wh = w_hidden.astype(param_dtype).astype(jnp.float32)
    wo = w_out.astype(param_dtype).astype(jnp.float32)
    h = z.astype(jnp.float32)
    h = h * jax.lax.rsqrt(jnp.mean(h * h, axis=1, keepdims=True) + epsilon)
    for l in range(wh.shape[0]):
        h = h @ (wh[l] * w_mul) + b_hidden[l] * lrmul
        h = jnp.where(h >= 0, h, neg_slope * h)
    h = h @ (wo * w_mul) + b_out.reshape(-1) * lrmul
    h = jnp.where(h >= 0, h, neg_slope * h)
    return h[:, :c], h[:, c:]


def adain_ref(x, z, w_hidden, b_hidden, w_out, b_out, *, c, epsilon=1e-8,
              param_dtype=jnp.float32):
    zm, zs = mapping_ref(z, w_hidden, b_hidden, w_out, b_out, c=c,
                         epsilon=epsilon, param_dtype=param_dtype)
    k = z.shape[0] // x.shape[0]
    x_rep = jnp.repeat(x, k, axis=0).astype(jnp.float32)
    return zm[:, None, :] + x_rep * (1.0 + zs[:, None, :])


if __name__ == "__main__":
    key = jax.random.PRNGKey(0)
    kx, kz, kw, kb, kwo, kbo = jax.random.split(key, 6)

    C = 128              # AdaIN channel count c (lane-dense: multiple of 128)
    BS_X, NP = 2, 2048   # image batch, tokens per image
    BS_Z, ZDIM = 4, 512  # latent batch (2 styles per image); latent dim fixed by module
    LAYERS = 8
    LRMUL = 0.01
    EPS = 1e-8
    init_std = 1.0 / LRMUL          # use_wscale=True -> torch init: randn * (1 / lrmul)

    x = jax.random.normal(kx, (BS_X, NP, C), dtype=jnp.float32)
    z = jax.random.normal(kz, (BS_Z, ZDIM), dtype=jnp.float32)
    # Mapping-net parameters, stored [in, out] (torch stores [out, in]; same linear map).
    w_hidden = jax.random.normal(kw, (LAYERS - 1, ZDIM, ZDIM), jnp.float32) * init_std
    b_hidden = jax.random.normal(kb, (LAYERS - 1, ZDIM), jnp.float32)
    w_out = jax.random.normal(kwo, (ZDIM, 2 * C), jnp.float32) * init_std
    b_out = jax.random.normal(kbo, (1, 2 * C), jnp.float32)

    out = adain_forward(x, z, w_hidden, b_hidden, w_out, b_out, c=C, epsilon=EPS)
    out = jax.block_until_ready(out)
    assert out.shape == (BS_Z, NP, C)

    # (a) Mapping kernel vs a reference using the SAME bf16-stored weights (isolates
    #     kernel correctness from the deliberate bf16 weight-storage choice; tolerance
    #     covers MXU-vs-XLA f32 matmul differences accumulated over 8 layers).
    style = mapping_network(z, w_hidden, b_hidden, w_out, b_out, c=C, epsilon=EPS)
    zm, zs = style[:, 0, :], style[:, 1, :]
    zm_r, zs_r = mapping_ref(z, w_hidden, b_hidden, w_out, b_out, c=C, epsilon=EPS,
                             param_dtype=jnp.bfloat16)
    assert jnp.allclose(zm, zm_r, atol=5e-2, rtol=5e-2)
    assert jnp.allclose(zs, zs_r, atol=5e-2, rtol=5e-2)

    # (b) Modulation kernel (incl. the folded repeat_interleave): tight elementwise
    #     check against the style produced by the Pallas mapping kernel itself.
    x_rep = jnp.repeat(x, BS_Z // BS_X, axis=0)
    mod_ref = zm[:, None, :] + x_rep * (1.0 + zs[:, None, :])
    assert jnp.allclose(out, mod_ref, atol=1e-4, rtol=1e-5)

    # (c) End-to-end vs the torch-mirroring JAX reference on the same bf16-quantized
    #     weights (loose: mapping matmul-precision deltas are amplified by x; the
    #     stage-wise checks above are the tight ones).
    ref = adain_ref(x, z, w_hidden, b_hidden, w_out, b_out, c=C, epsilon=EPS,
                    param_dtype=jnp.bfloat16)
    assert jnp.allclose(out, ref, atol=1e-1, rtol=1e-1)

    print("KERNEL_OK")
</pallas_src>

<mosaic_0001>
module attributes {stable_mosaic.version = 11 : i64} {
  func.func @_mapping_kernel(%arg0: i32, %arg1: memref<8x512xf32, #tpu.memory_space<vmem>>, %arg2: memref<1x512x512xbf16, #tpu.memory_space<vmem>>, %arg3: memref<1x1x512xf32, #tpu.memory_space<vmem>>, %arg4: memref<512x256xbf16, #tpu.memory_space<vmem>>, %arg5: memref<1x256xf32, #tpu.memory_space<vmem>>, %arg6: memref<8x2x128xf32, #tpu.memory_space<vmem>>, %arg7: memref<8x512xf32, #tpu.memory_space<vmem>>) attributes {dimension_semantics = [#tpu.dimension_semantics<arbitrary>], iteration_bounds = array<i64: 7>, scalar_prefetch = 0 : i64, scratch_operands = 1 : i64, tpu.core_type = #tpu.core_type<tc>, window_params = [{pipeline_mode = #tpu.pipeline_mode<synchronous>, transform_indices = @transform_0, window_bounds = array<i64: 8, 512>}, {transform_indices = @transform_1, window_bounds = array<i64: 1, 512, 512>}, {transform_indices = @transform_2, window_bounds = array<i64: 1, 1, 512>}, {pipeline_mode = #tpu.pipeline_mode<synchronous>, transform_indices = @transform_3, window_bounds = array<i64: 512, 256>}, {pipeline_mode = #tpu.pipeline_mode<synchronous>, transform_indices = @transform_4, window_bounds = array<i64: 1, 256>}, {pipeline_mode = #tpu.pipeline_mode<synchronous>, transform_indices = @transform_5, window_bounds = array<i64: 8, 2, 128>}]} {
    %c0_i32 = arith.constant 0 : i32
    %0 = arith.cmpi eq, %arg0, %c0_i32 : i32
    %1 = arith.extui %0 : i1 to i32
    %c0_i32_0 = arith.constant 0 : i32
    %2 = arith.cmpi ne, %1, %c0_i32_0 : i32
    scf.if %2 {
      %c0_15 = arith.constant 0 : index
      %c0_16 = arith.constant 0 : index
      %25 = vector.load %arg1[%c0_15, %c0_16] : memref<8x512xf32, #tpu.memory_space<vmem>>, vector<8x512xf32>
      %26 = arith.mulf %25, %25 : vector<8x512xf32>
      %cst_17 = arith.constant dense<0.000000e+00> : vector<8xf32>
      %27 = vector.multi_reduction <add>, %26, %cst_17 [1] : vector<8x512xf32> to vector<8xf32>
      %28 = vector.shape_cast %27 : vector<8xf32> to vector<8x1xf32>
      %cst_18 = arith.constant 5.120000e+02 : f32
      %29 = vector.broadcast %cst_18 : f32 to vector<8x1xf32>
      %30 = arith.divf %28, %29 : vector<8x1xf32>
      %cst_19 = arith.constant 9.99999993E-9 : f32
      %31 = vector.broadcast %cst_19 : f32 to vector<8x1xf32>
      %32 = arith.addf %30, %31 : vector<8x1xf32>
      %33 = math.rsqrt %32 : vector<8x1xf32>
      %34 = vector.broadcast %33 : vector<8x1xf32> to vector<8x512xf32>
      %35 = arith.mulf %25, %34 : vector<8x512xf32>
      %c0_20 = arith.constant 0 : index
      %c0_21 = arith.constant 0 : index
      %36 = vector.load %arg7[%c0_20, %c0_21] : memref<8x512xf32, #tpu.memory_space<vmem>>, vector<8x512xf32>
      tpu.vector_store %arg7[%c0_20, %c0_21], %35 {strides = array<i32>} : memref<8x512xf32, #tpu.memory_space<vmem>>, vector<8x512xf32>,
    } else {
    }
    %c0 = arith.constant 0 : index
    %c0_1 = arith.constant 0 : index
    %c0_2 = arith.constant 0 : index
    %3 = vector.load %arg2[%c0, %c0_1, %c0_2] : memref<1x512x512xbf16, #tpu.memory_space<vmem>>, vector<1x512x512xbf16>
    %4 = vector.shape_cast %3 : vector<1x512x512xbf16> to vector<512x512xbf16>
    %5 = arith.extf %4 : vector<512x512xbf16> to vector<512x512xf32>
    %c0_3 = arith.constant 0 : index
    %c0_4 = arith.constant 0 : index
    %c0_5 = arith.constant 0 : index
    %6 = vector.load %arg3[%c0_3, %c0_4, %c0_5] : memref<1x1x512xf32, #tpu.memory_space<vmem>>, vector<1x1x512xf32>
    %7 = vector.shape_cast %6 : vector<1x1x512xf32> to vector<1x512xf32>
    %c0_6 = arith.constant 0 : index
    %c0_7 = arith.constant 0 : index
    %8 = vector.load %arg7[%c0_6, %c0_7] : memref<8x512xf32, #tpu.memory_space<vmem>>, vector<8x512xf32>
    %cst = arith.constant dense<0.000000e+00> : vector<8x512xf32>
    %9 = tpu.matmul %8, %5, %cst {dimension_numbers = #tpu.dot_dimension_numbers<[1], [0], [0], [1], [0, 0, 1, 1], [], []>} : vector<8x512xf32>, vector<512x512xf32>, vector<8x512xf32> -> vector<8x512xf32>
    %cst_8 = arith.constant 6.250000e-04 : f32
    %10 = vector.broadcast %cst_8 : f32 to vector<8x512xf32>
    %11 = arith.mulf %9, %10 : vector<8x512xf32>
    %cst_9 = arith.constant 0.00999999977 : f32
    %12 = vector.broadcast %cst_9 : f32 to vector<1x512xf32>
    %13 = arith.mulf %7, %12 : vector<1x512xf32>
    %14 = vector.broadcast %13 : vector<1x512xf32> to vector<8x512xf32>
    %15 = arith.addf %11, %14 : vector<8x512xf32>
    %cst_10 = arith.constant 0.000000e+00 : f32
    %16 = vector.broadcast %cst_10 : f32 to vector<8x512xf32>
    %17 = arith.cmpf oge, %15, %16 : vector<8x512xf32>
    %cst_11 = arith.constant 2.000000e-01 : f32
    %18 = vector.broadcast %cst_11 : f32 to vector<8x512xf32>
    %19 = arith.mulf %18, %15 : vector<8x512xf32>
    %20 = arith.select %17, %15, %19 : vector<8x512xi1>, vector<8x512xf32>
    %c0_12 = arith.constant 0 : index
    %c0_13 = arith.constant 0 : index
    %21 = vector.load %arg7[%c0_12, %c0_13] : memref<8x512xf32, #tpu.memory_space<vmem>>, vector<8x512xf32>
    tpu.vector_store %arg7[%c0_12, %c0_13], %20 {strides = array<i32>} : memref<8x512xf32, #tpu.memory_space<vmem>>, vector<8x512xf32>,
    %c6_i32 = arith.constant 6 : i32
    %22 = arith.cmpi eq, %arg0, %c6_i32 : i32
    %23 = arith.extui %22 : i1 to i32
    %c0_i32_14 = arith.constant 0 : i32
    %24 = arith.cmpi ne, %23, %c0_i32_14 : i32
    scf.if %24 {
      %c0_15 = arith.constant 0 : index
      %c0_16 = arith.constant 0 : index
      %25 = vector.load %arg4[%c0_15, %c0_16] : memref<512x256xbf16, #tpu.memory_space<vmem>>, vector<512x256xbf16>
      %26 = arith.extf %25 : vector<512x256xbf16> to vector<512x256xf32>
      %c0_17 = arith.constant 0 : index
      %c0_18 = arith.constant 0 : index
      %27 = vector.load %arg7[%c0_17, %c0_18] : memref<8x512xf32, #tpu.memory_space<vmem>>, vector<8x512xf32>
      %cst_19 = arith.constant dense<0.000000e+00> : vector<8x256xf32>
      %28 = tpu.matmul %27, %26, %cst_19 {dimension_numbers = #tpu.dot_dimension_numbers<[1], [0], [0], [1], [0, 0, 1, 1], [], []>} : vector<8x512xf32>, vector<512x256xf32>, vector<8x256xf32> -> vector<8x256xf32>
      %cst_20 = arith.constant 6.250000e-04 : f32
      %29 = vector.broadcast %cst_20 : f32 to vector<8x256xf32>
      %30 = arith.mulf %28, %29 : vector<8x256xf32>
      %c0_21 = arith.constant 0 : index
      %c0_22 = arith.constant 0 : index
      %31 = vector.load %arg5[%c0_21, %c0_22] : memref<1x256xf32, #tpu.memory_space<vmem>>, vector<1x256xf32>
      %cst_23 = arith.constant 0.00999999977 : f32
      %32 = vector.broadcast %cst_23 : f32 to vector<1x256xf32>
      %33 = arith.mulf %31, %32 : vector<1x256xf32>
      %34 = vector.broadcast %33 : vector<1x256xf32> to vector<8x256xf32>
      %35 = arith.addf %30, %34 : vector<8x256xf32>
      %cst_24 = arith.constant 0.000000e+00 : f32
      %36 = vector.broadcast %cst_24 : f32 to vector<8x256xf32>
      %37 = arith.cmpf oge, %35, %36 : vector<8x256xf32>
      %cst_25 = arith.constant 2.000000e-01 : f32
      %38 = vector.broadcast %cst_25 : f32 to vector<8x256xf32>
      %39 = arith.mulf %38, %35 : vector<8x256xf32>
      %40 = arith.select %37, %35, %39 : vector<8x256xi1>, vector<8x256xf32>
      %41 = vector.extract_strided_slice %40 {offsets = [0, 0], sizes = [8, 128], strides = [1, 1]} : vector<8x256xf32> to vector<8x128xf32>
      %42 = vector.shape_cast %41 : vector<8x128xf32> to vector<8x1x128xf32>
      %c0_26 = arith.constant 0 : index
      %c0_27 = arith.constant 0 : index
      %c0_28 = arith.constant 0 : index
      %43 = vector.load %arg6[%c0_26, %c0_27, %c0_28] : memref<8x2x128xf32, #tpu.memory_space<vmem>>, vector<8x1x128xf32>
      tpu.vector_store %arg6[%c0_26, %c0_27, %c0_28], %42 {strides = array<i32>} : memref<8x2x128xf32, #tpu.memory_space<vmem>>, vector<8x1x128xf32>,
      %44 = vector.extract_strided_slice %40 {offsets = [0, 128], sizes = [8, 128], strides = [1, 1]} : vector<8x256xf32> to vector<8x128xf32>
      %45 = vector.shape_cast %44 : vector<8x128xf32> to vector<8x1x128xf32>
      %c0_29 = arith.constant 0 : index
      %c1 = arith.constant 1 : index
      %c0_30 = arith.constant 0 : index
      %46 = vector.load %arg6[%c0_29, %c1, %c0_30] : memref<8x2x128xf32, #tpu.memory_space<vmem>>, vector<8x1x128xf32>
      tpu.vector_store %arg6[%c0_29, %c1, %c0_30], %45 {strides = array<i32>} : memref<8x2x128xf32, #tpu.memory_space<vmem>>, vector<8x1x128xf32>,
    } else {
    }
    return
  }
  func.func @transform_0(%arg0: i32) -> (i32, i32) {
    %c0_i32 = arith.constant 0 : i32
    %c0_i32_0 = arith.constant 0 : i32
    %c0_i32_1 = arith.constant 0 : i32
    return %c0_i32, %c0_i32_0 : i32, i32
  }
  func.func @transform_1(%arg0: i32) -> (i32, i32, i32) {
    %c0_i32 = arith.constant 0 : i32
    %c0_i32_0 = arith.constant 0 : i32
    %c0_i32_1 = arith.constant 0 : i32
    return %arg0, %c0_i32, %c0_i32_0 : i32, i32, i32
  }
  func.func @transform_2(%arg0: i32) -> (i32, i32, i32) {
    %c0_i32 = arith.constant 0 : i32
    %c0_i32_0 = arith.constant 0 : i32
    %c0_i32_1 = arith.constant 0 : i32
    return %arg0, %c0_i32, %c0_i32_0 : i32, i32, i32
  }
  func.func @transform_3(%arg0: i32) -> (i32, i32) {
    %c0_i32 = arith.constant 0 : i32
    %c0_i32_0 = arith.constant 0 : i32
    %c0_i32_1 = arith.constant 0 : i32
    return %c0_i32, %c0_i32_0 : i32, i32
  }
  func.func @transform_4(%arg0: i32) -> (i32, i32) {
    %c0_i32 = arith.constant 0 : i32
    %c0_i32_0 = arith.constant 0 : i32
    %c0_i32_1 = arith.constant 0 : i32
    return %c0_i32, %c0_i32_0 : i32, i32
  }
  func.func @transform_5(%arg0: i32) -> (i32, i32, i32) {
    %c0_i32 = arith.constant 0 : i32
    %c0_i32_0 = arith.constant 0 : i32
    %c0_i32_1 = arith.constant 0 : i32
    %c0_i32_2 = arith.constant 0 : i32
    return %c0_i32, %c0_i32_0, %c0_i32_1 : i32, i32, i32
  }
}

</mosaic_0001>

<llo_original>
// kernel: tpu_custom_call.1
$region0: #{tpu_custom_call.1}
  #allocation0 [shape = 'u32[]', space=smem, size = 0x4, offset = 0x4, fixed_abs, tag = 'smem constant byte address 0x4 - core index']
  #allocation1 [shape = 'u32[144,128]{1,0:T(1,128)}', space=vmem, size = 0x12000, scoped, tag = 'internal scratch']
  #allocation2 [shape = 'f32[8,512]{1,0:T(8,128)}', space=vmem, size = 0x4000, scoped, tag = 'scratch operand']
  %s0 = inlined_call_operand.hbm [shape: f32[8,512], index: 0, kind: input, shape index: {}]
  %s1 = inlined_call_operand.hbm [shape: bf16[7,512,512], index: 1, kind: input, shape index: {}]
  %s2 = inlined_call_operand.hbm [shape: f32[7,1,512], index: 2, kind: input, shape index: {}]
  %s3 = inlined_call_operand.hbm [shape: bf16[512,256], index: 3, kind: input, shape index: {}]
  %s4 = inlined_call_operand.hbm [shape: f32[1,256], index: 4, kind: input, shape index: {}]
  %s5 = inlined_call_operand.hbm [shape: f32[8,2,128], index: 5, kind: output, shape index: {}]
  %s6 = sld [smem:[#allocation0]]
  $region81: #{tpu_custom_call.1} parent=0
    _
  %s8 = ssub.s32 1, %s6
  %s9 = scalar_select 0, %s8, %s6
  $region1: #{tpu_custom_call.1} parent=0
    #allocation3 [shape = 'u8[16384]{0}', space=vmem, size = 0x4000, scoped, tag = 'input window, operand 0, single buffered']
    #allocation4 [shape = 's32[2]{0}', space=sflag, size = 0x8, scoped, tag = 'scoped memory for tpu_custom_call.1']
    #allocation5 [shape = 's32[2]{0}', space=sflag, size = 0x8, scoped, tag = 'scoped memory for tpu_custom_call.1']
    #allocation6 [shape = 'u8[1048576]{0}', space=vmem, size = 0x100000, scoped, tag = 'input window, operand 1']
    #allocation7 [shape = 's32[2]{0}', space=sflag, size = 0x8, scoped, tag = 'scoped memory for tpu_custom_call.1']
    #allocation8 [shape = 'u8[4096]{0}', space=vmem, size = 0x1000, scoped, tag = 'input window, operand 2']
    #allocation9 [shape = 'u8[262144]{0}', space=vmem, size = 0x40000, scoped, tag = 'input window, operand 3, single buffered']
    #allocation10 [shape = 's32[1]{0}', space=sflag, size = 0x4, scoped, tag = 'scoped memory for tpu_custom_call.1']
    #allocation11 [shape = 'u8[1024]{0}', space=vmem, size = 0x400, scoped, tag = 'input window, operand 4, single buffered']
    #allocation12 [shape = 'u8[8192]{0}', space=vmem, size = 0x2000, scoped, tag = 'output window, operand 0, single buffered']
    %10 = vsyncpa [#allocation4], 0
    %11 = vsyncpa [#allocation7], 0
    %s12 = scalar_lea.sflag [#allocation7], 1
    %13 = vsyncpa %s12, 0
    %14 = vsyncpa [#allocation10], 0
    %15 = vsyncpa [#allocation5], 0
    loop: start=0, step=1, limit=9
    $region2: #{tpu_custom_call.1} parent=1 // loop_pre_header
      _
    $region3: #{tpu_custom_call.1} parent=1 // loop_header
      %s17 = sphi 0, %s21
      %p18 = scmp.ge.s32.totalorder %s17, 9
      %s25 = sphi 0, %s25
      %s27 = sphi 0, %s25
      %s28 = sphi 0, %s27
      %s42 = sphi 0, %s28
      %s48 = sphi 0, %s50
      %s51 = sphi 0, %s48
      %s52 = sphi 0, %s51
      %s68 = sphi 0, %s52
      %s74 = sphi 0, %s76
      %s77 = sphi 0, %s74
      %s78 = sphi 0, %s77
      %s94 = sphi 0, %s78
      %s98 = sphi 0, %s98
      %s100 = sphi 0, %s98
      %s101 = sphi 0, %s100
      %s115 = sphi 0, %s101
      %s119 = sphi 0, %s119
      %s121 = sphi 0, %s119
      %s122 = sphi 0, %s121
      %s136 = sphi 0, %s122
      %s140 = sphi 0, %s140
      %s142 = sphi 0, %s140
      %s143 = sphi 0, %s142
      %s157 = sphi 0, %s143
    $region4: #{tpu_custom_call.1} parent=1 // loop_header_branch
      %20 = sbr.rel (%p18) target = $region8
    $region5: #{tpu_custom_call.1} parent=1 // loop_body
      %s22 = ssub.s32 %s17, 1
      %s23 = ssub.s32 %s17, 2
      %s24 = sadd.s32 %s17, 1
      %s26 = sadd.s32 %s25, 1
      %p29 = scmp.eq.s32.totalorder %s17, 6
      %p30 = scmp.ne.s32.totalorder %s25, %s27
      %p31 = scmp.eq.s32.totalorder %s17, 0
      %p32 = por %p30, %p31
      %p33 = scmp.ne.s32.totalorder %s25, %s27
      %p34 = scmp.eq.s32.totalorder %s22, 6
      %p35 = por %p33, %p34
      %p36 = scmp.ne.s32.totalorder %s27, %s28
      %p37 = scmp.eq.s32.totalorder %s22, 0
      %p38 = por %p36, %p37
      %p39 = scmp.ne.s32.totalorder %s27, %s28
      %p40 = scmp.eq.s32.totalorder %s23, 6
      %p41 = por %p39, %p40
      %p43 = scmp.ne.s32.totalorder %s28, %s42
      %p44 = scmp.eq.s32.totalorder %s23, 0
      %p45 = por %p43, %p44
      %s46 = ssub.s32 %s17, %s24
      %p47 = scmp.eq.s32.totalorder %s46, 0
      %s49 = sadd.s32 %s48, 1
      %s50 = scalar_select %p47, %s48, %s49
      %p53 = pneg %p47
      %p54 = scmp.eq.s32.totalorder %s17, 6
      %p55 = por %p53, %p54
      %p56 = scmp.ne.s32.totalorder %s48, %s51
      %p57 = scmp.eq.s32.totalorder %s17, 0
      %p58 = por %p56, %p57
      %p59 = scmp.ne.s32.totalorder %s48, %s51
      %p60 = scmp.eq.s32.totalorder %s22, 6
      %p61 = por %p59, %p60
      %p62 = scmp.ne.s32.totalorder %s51, %s52
      %p63 = scmp.eq.s32.totalorder %s22, 0
      %p64 = por %p62, %p63
      %p65 = scmp.ne.s32.totalorder %s51, %s52
      %p66 = scmp.eq.s32.totalorder %s23, 6
      %p67 = por %p65, %p66
      %p69 = scmp.ne.s32.totalorder %s52, %s68
      %p70 = scmp.eq.s32.totalorder %s23, 0
      %p71 = por %p69, %p70
      %s72 = ssub.s32 %s17, %s24
      %p73 = scmp.eq.s32.totalorder %s72, 0
      %s75 = sadd.s32 %s74, 1
      %s76 = scalar_select %p73, %s74, %s75
      %p79 = pneg %p73
      %p80 = scmp.eq.s32.totalorder %s17, 6
      %p81 = por %p79, %p80
      %p82 = scmp.ne.s32.totalorder %s74, %s77
      %p83 = scmp.eq.s32.totalorder %s17, 0
      %p84 = por %p82, %p83
      %p85 = scmp.ne.s32.totalorder %s74, %s77
      %p86 = scmp.eq.s32.totalorder %s22, 6
      %p87 = por %p85, %p86
      %p88 = scmp.ne.s32.totalorder %s77, %s78
      %p89 = scmp.eq.s32.totalorder %s22, 0
      %p90 = por %p88, %p89
      %p91 = scmp.ne.s32.totalorder %s77, %s78
      %p92 = scmp.eq.s32.totalorder %s23, 6
      %p93 = por %p91, %p92
      %p95 = scmp.ne.s32.totalorder %s78, %s94
      %p96 = scmp.eq.s32.totalorder %s23, 0
      %p97 = por %p95, %p96
      %s99 = sadd.s32 %s98, 1
      %p102 = scmp.eq.s32.totalorder %s17, 6
      %p103 = scmp.ne.s32.totalorder %s98, %s100
      %p104 = scmp.eq.s32.totalorder %s17, 0
      %p105 = por %p103, %p104
      %p106 = scmp.ne.s32.totalorder %s98, %s100
      %p107 = scmp.eq.s32.totalorder %s22, 6
      %p108 = por %p106, %p107
      %p109 = scmp.ne.s32.totalorder %s100, %s101
      %p110 = scmp.eq.s32.totalorder %s22, 0
      %p111 = por %p109, %p110
      %p112 = scmp.ne.s32.totalorder %s100, %s101
      %p113 = scmp.eq.s32.totalorder %s23, 6
      %p114 = por %p112, %p113
      %p116 = scmp.ne.s32.totalorder %s101, %s115
      %p117 = scmp.eq.s32.totalorder %s23, 0
      %p118 = por %p116, %p117
      %s120 = sadd.s32 %s119, 1
      %p123 = scmp.eq.s32.totalorder %s17, 6
      %p124 = scmp.ne.s32.totalorder %s119, %s121
      %p125 = scmp.eq.s32.totalorder %s17, 0
      %p126 = por %p124, %p125
      %p127 = scmp.ne.s32.totalorder %s119, %s121
      %p128 = scmp.eq.s32.totalorder %s22, 6
      %p129 = por %p127, %p128
      %p130 = scmp.ne.s32.totalorder %s121, %s122
      %p131 = scmp.eq.s32.totalorder %s22, 0
      %p132 = por %p130, %p131
      %p133 = scmp.ne.s32.totalorder %s121, %s122
      %p134 = scmp.eq.s32.totalorder %s23, 6
      %p135 = por %p133, %p134
      %p137 = scmp.ne.s32.totalorder %s122, %s136
      %p138 = scmp.eq.s32.totalorder %s23, 0
      %p139 = por %p137, %p138
      %s141 = sadd.s32 %s140, 1
      %p144 = scmp.eq.s32.totalorder %s17, 6
      %p145 = scmp.ne.s32.totalorder %s140, %s142
      %p146 = scmp.eq.s32.totalorder %s17, 0
      %p147 = por %p145, %p146
      %p148 = scmp.ne.s32.totalorder %s140, %s142
      %p149 = scmp.eq.s32.totalorder %s22, 6
      %p150 = por %p148, %p149
      %p151 = scmp.ne.s32.totalorder %s142, %s143
      %p152 = scmp.eq.s32.totalorder %s22, 0
      %p153 = por %p151, %p152
      %p154 = scmp.ne.s32.totalorder %s142, %s143
      %p155 = scmp.eq.s32.totalorder %s23, 6
      %p156 = por %p154, %p155
      %p158 = scmp.ne.s32.totalorder %s143, %s157
      %p159 = scmp.eq.s32.totalorder %s23, 0
      %p160 = por %p158, %p159
      %p161 = scmp.le.s32.totalorder 1, %s17
      %p162 = scmp.lt.s32.totalorder %s17, 8
      %p163 = pnand %p161, %p162
      %p164 = pneg %p163
      // Predicated region
      $region9: #{tpu_custom_call.1} parent=5 // pred_check
        _
      $region10: #{tpu_custom_call.1} parent=5 // pred_check_branch
        %166 = sbr.rel (%p163) target = $region12
      $region11: #{tpu_custom_call.1} parent=5 // pred_region
        %s167 = ssub.s32 %s17, 1
        // Predicated region
        $region13: #{tpu_custom_call.1} parent=11 // pred_check
          %p168 = pneg %p38
        $region14: #{tpu_custom_call.1} parent=11 // pred_check_branch
          %170 = sbr.rel (%p168) target = $region16
        $region15: #{tpu_custom_call.1} parent=11 // pred_region
          %s172 = ssub.s32 512, 512
          %173 = vsyncadd [#allocation4], %s172
          %s175 = sshll.u32 [#allocation3], 4
          %s176 = int_to_ptr.vmem [resolvable:$true] %s175
          %178 = dma.hbm_to_vmem [thread:$0]  %s0, 512, %s176, [#allocation4]
        $region16: #{tpu_custom_call.1} parent=11 // pred_fallthru
          _
        // Predicated region
        $region17: #{tpu_custom_call.1} parent=11 // pred_check
          %p179 = pneg %p111
        $region18: #{tpu_custom_call.1} parent=11 // pred_check_branch
          %181 = sbr.rel (%p179) target = $region20
        $region19: #{tpu_custom_call.1} parent=11 // pred_region
          %s183 = ssub.s32 8192, 8192
          %184 = vsyncadd [#allocation10], %s183
          %s185 = sshll.u32 [#allocation9], 4
          %s186 = int_to_ptr.vmem [resolvable:$true] %s185
          %191 = dma.hbm_to_vmem [thread:$0]  %s3, 8192, %s186, [#allocation10], 128, 128, 8
        $region20: #{tpu_custom_call.1} parent=11 // pred_fallthru
          _
        // Predicated region
        $region21: #{tpu_custom_call.1} parent=11 // pred_check
          %p192 = pneg %p132
        $region22: #{tpu_custom_call.1} parent=11 // pred_check_branch
          %194 = sbr.rel (%p192) target = $region24
        $region23: #{tpu_custom_call.1} parent=11 // pred_region
          %s196 = ssub.s32 32, 32
          %197 = vsyncadd [#allocation10], %s196
          %s199 = sshll.u32 [#allocation11], 4
          %s200 = int_to_ptr.vmem [resolvable:$true] %s199
          %202 = dma.hbm_to_vmem [thread:$0]  %s4, 32, %s200, [#allocation10]
        $region24: #{tpu_custom_call.1} parent=11 // pred_fallthru
          _
      $region12: #{tpu_custom_call.1} parent=5 // pred_fallthru
        _
      %p203 = scmp.lt.s32.totalorder %s17, 7
      // Predicated region
      $region25: #{tpu_custom_call.1} parent=5 // pred_check
        %p204 = pneg %p203
      $region26: #{tpu_custom_call.1} parent=5 // pred_check_branch
        %206 = sbr.rel (%p204) target = $region28
      $region27: #{tpu_custom_call.1} parent=5 // pred_region
        // Predicated region
        $region29: #{tpu_custom_call.1} parent=27 // pred_check
          %p207 = pneg %p58
        $region30: #{tpu_custom_call.1} parent=27 // pred_check_branch
          %209 = sbr.rel (%p207) target = $region32
        $region31: #{tpu_custom_call.1} parent=27 // pred_region
          %s210 = sand.u32 %s17, 1
          %s211 = scalar_lea.sflag [#allocation7], %s210
          %s212 = sand.u32 %s48, 1
          %s213 = smul.addr %s212, 1024
          %s214 = scalar_lea.vmem [#allocation6], %s213
          %s216 = ssub.s32 16384, 16384
          %217 = vsyncadd %s211, %s216
          %s218 = smul.addr %s17, 256
          %s219 = smul.addr %s218, 64
          %s220 = scalar_lea.hbm %s1, %s219
          %s221 = sshll.u32 %s214, 4
          %s222 = int_to_ptr.vmem [resolvable:$true] %s221
          %227 = dma.hbm_to_vmem [thread:$0]  %s220, 16384, %s222, %s211, 256, 256, 16
        $region32: #{tpu_custom_call.1} parent=27 // pred_fallthru
          _
        // Predicated region
        $region33: #{tpu_custom_call.1} parent=27 // pred_check
          %p228 = pneg %p84
        $region34: #{tpu_custom_call.1} parent=27 // pred_check_branch
          %230 = sbr.rel (%p228) target = $region36
        $region35: #{tpu_custom_call.1} parent=27 // pred_region
          %s231 = sand.u32 %s17, 1
          %s232 = scalar_lea.sflag [#allocation7], %s231
          %s233 = sand.u32 %s74, 1
          %s234 = smul.addr %s233, 4
          %s235 = scalar_lea.vmem [#allocation8], %s234
          %s237 = ssub.s32 64, 64
          %238 = vsyncadd %s232, %s237
          %s239 = smul.addr %s17, 4
          %s240 = smul.addr %s239, 16
          %s241 = scalar_lea.hbm %s2, %s240
          %s243 = sshll.u32 %s235, 4
          %s244 = int_to_ptr.vmem [resolvable:$true] %s243
          %246 = dma.hbm_to_vmem [thread:$0]  %s241, 64, %s244, %s232
        $region36: #{tpu_custom_call.1} parent=27 // pred_fallthru
          _
      $region28: #{tpu_custom_call.1} parent=5 // pred_fallthru
        _
      %p247 = scmp.le.s32.totalorder 1, %s17
      %p248 = scmp.lt.s32.totalorder %s17, 8
      %p249 = pnand %p247, %p248
      %p250 = pneg %p249
      // Predicated region
      $region37: #{tpu_custom_call.1} parent=5 // pred_check
        _
      $region38: #{tpu_custom_call.1} parent=5 // pred_check_branch
        %252 = sbr.rel (%p249) target = $region40
      $region39: #{tpu_custom_call.1} parent=5 // pred_region
        %s253 = ssub.s32 %s17, 1
        // Predicated region
        $region41: #{tpu_custom_call.1} parent=39 // pred_check
          %p254 = pneg %p38
        $region42: #{tpu_custom_call.1} parent=39 // pred_check_branch
          %256 = sbr.rel (%p254) target = $region44
        $region43: #{tpu_custom_call.1} parent=39 // pred_region
          %257 = dma.done [#allocation4], 512
        $region44: #{tpu_custom_call.1} parent=39 // pred_fallthru
          _
        %s258 = sand.u32 %s22, 1
        %s259 = scalar_lea.sflag [#allocation7], %s258
        %s260 = sand.u32 %s51, 1
        %s261 = smul.addr %s260, 1024
        %s262 = scalar_lea.vmem [#allocation6], %s261
        // Predicated region
        $region45: #{tpu_custom_call.1} parent=39 // pred_check
          %p263 = pneg %p64
        $region46: #{tpu_custom_call.1} parent=39 // pred_check_branch
          %265 = sbr.rel (%p263) target = $region48
        $region47: #{tpu_custom_call.1} parent=39 // pred_region
          %266 = dma.done %s259, 16384
        $region48: #{tpu_custom_call.1} parent=39 // pred_fallthru
          _
        %s267 = sand.u32 %s22, 1
        %s268 = scalar_lea.sflag [#allocation7], %s267
        %s269 = sand.u32 %s77, 1
        %s270 = smul.addr %s269, 4
        %s271 = scalar_lea.vmem [#allocation8], %s270
        // Predicated region
        $region49: #{tpu_custom_call.1} parent=39 // pred_check
          %p272 = pneg %p90
        $region50: #{tpu_custom_call.1} parent=39 // pred_check_branch
          %274 = sbr.rel (%p272) target = $region52
        $region51: #{tpu_custom_call.1} parent=39 // pred_region
          %275 = dma.done %s268, 64
        $region52: #{tpu_custom_call.1} parent=39 // pred_fallthru
          _
        // Predicated region
        $region53: #{tpu_custom_call.1} parent=39 // pred_check
          %p276 = pneg %p111
        $region54: #{tpu_custom_call.1} parent=39 // pred_check_branch
          %278 = sbr.rel (%p276) target = $region56
        $region55: #{tpu_custom_call.1} parent=39 // pred_region
          %279 = dma.done [#allocation10], 8192
        $region56: #{tpu_custom_call.1} parent=39 // pred_fallthru
          _
        // Predicated region
        $region57: #{tpu_custom_call.1} parent=39 // pred_check
          %p280 = pneg %p132
        $region58: #{tpu_custom_call.1} parent=39 // pred_check_branch
          %282 = sbr.rel (%p280) target = $region60
        $region59: #{tpu_custom_call.1} parent=39 // pred_region
          %283 = dma.done [#allocation10], 32
        $region60: #{tpu_custom_call.1} parent=39 // pred_fallthru
          _
        %p284 = pneg %p38
        %p285 = pneg %p35
        %s286 = sand.u32 %s22, 1
        %s287 = scalar_lea.sflag [#allocation7], %s286
        %s288 = sand.u32 %s51, 1
        %s289 = smul.addr %s288, 1024
        %s290 = scalar_lea.vmem [#allocation6], %s289
        %p291 = pneg %p64
        %p292 = pneg %p61
        %s293 = sand.u32 %s22, 1
        %s294 = scalar_lea.sflag [#allocation7], %s293
        %s295 = sand.u32 %s77, 1
        %s296 = smul.addr %s295, 4
        %s297 = scalar_lea.vmem [#allocation8], %s296
        %p298 = pneg %p90
        %p299 = pneg %p87
        %p300 = pneg %p111
        %p301 = pneg %p108
        %p302 = pneg %p132
        %p303 = pneg %p129
        %p304 = pneg %p153
        %p305 = pneg %p150
        %p306 = scmp.eq.s32.totalorder %s22, 0
        // Predicated region
        $region61: #{tpu_custom_call.1} parent=39 // pred_check
          %p307 = pneg %p306
        $region62: #{tpu_custom_call.1} parent=39 // pred_check_branch
          %309 = sbr.rel (%p307) target = $region64
        $region63: #{tpu_custom_call.1} parent=39 // pred_region
          %v310 = vld [vmem:[#allocation3] sm:$0xff]
          %v311 = vld [vmem:[#allocation3 + $0x8] sm:$0xff]
          %v312 = vld [vmem:[#allocation3 + $0x10] sm:$0xff]
          %v313 = vld [vmem:[#allocation3 + $0x18] sm:$0xff]
          %v314 = vmul.f32 %v310, %v310
          %v315 = vmul.f32 %v311, %v311
          %v316 = vmul.f32 %v312, %v312
          %v317 = vmul.f32 %v313, %v313
          %v318 = vadd.f32 %v314, %v315
          %v319 = vadd.f32 %v318, %v316
          %v320 = vadd.f32 %v319, %v317
          %321 = vadd.xlane.f32.xlu0 %v320
          %v322 = vpop.xlane.xlu0 %321
          %v323 = vrcp.pop 512.0
          %v324 = vmul.f32 %v322, %v323
          %v325 = vadd.f32 %v324, 1e-08
          %v326 = vrsqrt.pop %v325
          %v327 = vmul.f32 %v310, %v326
          %v328 = vmul.f32 %v311, %v326
          %v329 = vmul.f32 %v312, %v326
          %v330 = vmul.f32 %v313, %v326
          %331 = vst [vmem:[#allocation2] sm:$0xff] %v327
          %332 = vst [vmem:[#allocation2 + $0x8] sm:$0xff] %v328
          %333 = vst [vmem:[#allocation2 + $0x10] sm:$0xff] %v329
          %334 = vst [vmem:[#allocation2 + $0x18] sm:$0xff] %v330
        $region64: #{tpu_custom_call.1} parent=39 // pred_fallthru
          _
        %v335 = vld [vmem:[%s262] sm:$0xff]
        %v336 = vld [vmem:[%s262 + $0x8] sm:$0xff]
        %v337 = vld [vmem:[%s262 + $0x10] sm:$0xff]
        %v338 = vld [vmem:[%s262 + $0x18] sm:$0xff]
        %v339 = vld [vmem:[%s262 + $0x20] sm:$0xff]
        %v340 = vld [vmem:[%s262 + $0x28] sm:$0xff]
        %v341 = vld [vmem:[%s262 + $0x30] sm:$0xff]
        %v342 = vld [vmem:[%s262 + $0x38] sm:$0xff]
        %v343 = vld [vmem:[%s262 + $0x40] sm:$0xff]
        %v344 = vld [vmem:[%s262 + $0x48] sm:$0xff]
        %v345 = vld [vmem:[%s262 + $0x50] sm:$0xff]
        %v346 = vld [vmem:[%s262 + $0x58] sm:$0xff]
        %v347 = vld [vmem:[%s262 + $0x60] sm:$0xff]
        %v348 = vld [vmem:[%s262 + $0x68] sm:$0xff]
        %v349 = vld [vmem:[%s262 + $0x70] sm:$0xff]
        %v350 = vld [vmem:[%s262 + $0x78] sm:$0xff]
        %v351 = vld [vmem:[%s262 + $0x80] sm:$0xff]
        %v352 = vld [vmem:[%s262 + $0x88] sm:$0xff]
        %v353 = vld [vmem:[%s262 + $0x90] sm:$0xff]
        %v354 = vld [vmem:[%s262 + $0x98] sm:$0xff]
        %v355 = vld [vmem:[%s262 + $0xa0] sm:$0xff]
        %v356 = vld [vmem:[%s262 + $0xa8] sm:$0xff]
        %v357 = vld [vmem:[%s262 + $0xb0] sm:$0xff]
        %v358 = vld [vmem:[%s262 + $0xb8] sm:$0xff]
        %v359 = vld [vmem:[%s262 + $0xc0] sm:$0xff]
        %v360 = vld [vmem:[%s262 + $0xc8] sm:$0xff]
        %v361 = vld [vmem:[%s262 + $0xd0] sm:$0xff]
        %v362 = vld [vmem:[%s262 + $0xd8] sm:$0xff]
        %v363 = vld [vmem:[%s262 + $0xe0] sm:$0xff]
        %v364 = vld [vmem:[%s262 + $0xe8] sm:$0xff]
        %v365 = vld [vmem:[%s262 + $0xf0] sm:$0xff]
        %v366 = vld [vmem:[%s262 + $0xf8] sm:$0xff]
        %v367 = vld [vmem:[%s262 + $0x100] sm:$0xff]
        %v368 = vld [vmem:[%s262 + $0x108] sm:$0xff]
        %v369 = vld [vmem:[%s262 + $0x110] sm:$0xff]
        %v370 = vld [vmem:[%s262 + $0x118] sm:$0xff]
        %v371 = vld [vmem:[%s262 + $0x120] sm:$0xff]
        %v372 = vld [vmem:[%s262 + $0x128] sm:$0xff]
        %v373 = vld [vmem:[%s262 + $0x130] sm:$0xff]
        %v374 = vld [vmem:[%s262 + $0x138] sm:$0xff]
        %v375 = vld [vmem:[%s262 + $0x140] sm:$0xff]
        %v376 = vld [vmem:[%s262 + $0x148] sm:$0xff]
        %v377 = vld [vmem:[%s262 + $0x150] sm:$0xff]
        %v378 = vld [vmem:[%s262 + $0x158] sm:$0xff]
        %v379 = vld [vmem:[%s262 + $0x160] sm:$0xff]
        %v380 = vld [vmem:[%s262 + $0x168] sm:$0xff]
        %v381 = vld [vmem:[%s262 + $0x170] sm:$0xff]
        %v382 = vld [vmem:[%s262 + $0x178] sm:$0xff]
        %v383 = vld [vmem:[%s262 + $0x180] sm:$0xff]
        %v384 = vld [vmem:[%s262 + $0x188] sm:$0xff]
        %v385 = vld [vmem:[%s262 + $0x190] sm:$0xff]
        %v386 = vld [vmem:[%s262 + $0x198] sm:$0xff]
        %v387 = vld [vmem:[%s262 + $0x1a0] sm:$0xff]
        %v388 = vld [vmem:[%s262 + $0x1a8] sm:$0xff]
        %v389 = vld [vmem:[%s262 + $0x1b0] sm:$0xff]
        %v390 = vld [vmem:[%s262 + $0x1b8] sm:$0xff]
        %v391 = vld [vmem:[%s262 + $0x1c0] sm:$0xff]
        %v392 = vld [vmem:[%s262 + $0x1c8] sm:$0xff]
        %v393 = vld [vmem:[%s262 + $0x1d0] sm:$0xff]
        %v394 = vld [vmem:[%s262 + $0x1d8] sm:$0xff]
        %v395 = vld [vmem:[%s262 + $0x1e0] sm:$0xff]
        %v396 = vld [vmem:[%s262 + $0x1e8] sm:$0xff]
        %v397 = vld [vmem:[%s262 + $0x1f0] sm:$0xff]
        %v398 = vld [vmem:[%s262 + $0x1f8] sm:$0xff]
        %v399 = vld [vmem:[%s262 + $0x200] sm:$0xff]
        %v400 = vld [vmem:[%s262 + $0x208] sm:$0xff]
        %v401 = vld [vmem:[%s262 + $0x210] sm:$0xff]
        %v402 = vld [vmem:[%s262 + $0x218] sm:$0xff]
        %v403 = vld [vmem:[%s262 + $0x220] sm:$0xff]
        %v404 = vld [vmem:[%s262 + $0x228] sm:$0xff]
        %v405 = vld [vmem:[%s262 + $0x230] sm:$0xff]
        %v406 = vld [vmem:[%s262 + $0x238] sm:$0xff]
        %v407 = vld [vmem:[%s262 + $0x240] sm:$0xff]
        %v408 = vld [vmem:[%s262 + $0x248] sm:$0xff]
        %v409 = vld [vmem:[%s262 + $0x250] sm:$0xff]
        %v410 = vld [vmem:[%s262 + $0x258] sm:$0xff]
        %v411 = vld [vmem:[%s262 + $0x260] sm:$0xff]
        %v412 = vld [vmem:[%s262 + $0x268] sm:$0xff]
        %v413 = vld [vmem:[%s262 + $0x270] sm:$0xff]
        %v414 = vld [vmem:[%s262 + $0x278] sm:$0xff]
        %v415 = vld [vmem:[%s262 + $0x280] sm:$0xff]
        %v416 = vld [vmem:[%s262 + $0x288] sm:$0xff]
        %v417 = vld [vmem:[%s262 + $0x290] sm:$0xff]
        %v418 = vld [vmem:[%s262 + $0x298] sm:$0xff]
        %v419 = vld [vmem:[%s262 + $0x2a0] sm:$0xff]
        %v420 = vld [vmem:[%s262 + $0x2a8] sm:$0xff]
        %v421 = vld [vmem:[%s262 + $0x2b0] sm:$0xff]
        %v422 = vld [vmem:[%s262 + $0x2b8] sm:$0xff]
        %v423 = vld [vmem:[%s262 + $0x2c0] sm:$0xff]
        %v424 = vld [vmem:[%s262 + $0x2c8] sm:$0xff]
        %v425 = vld [vmem:[%s262 + $0x2d0] sm:$0xff]
        %v426 = vld [vmem:[%s262 + $0x2d8] sm:$0xff]
        %v427 = vld [vmem:[%s262 + $0x2e0] sm:$0xff]
        %v428 = vld [vmem:[%s262 + $0x2e8] sm:$0xff]
        %v429 = vld [vmem:[%s262 + $0x2f0] sm:$0xff]
        %v430 = vld [vmem:[%s262 + $0x2f8] sm:$0xff]
        %v431 = vld [vmem:[%s262 + $0x300] sm:$0xff]
        %v432 = vld [vmem:[%s262 + $0x308] sm:$0xff]
        %v433 = vld [vmem:[%s262 + $0x310] sm:$0xff]
        %v434 = vld [vmem:[%s262 + $0x318] sm:$0xff]
        %v435 = vld [vmem:[%s262 + $0x320] sm:$0xff]
        %v436 = vld [vmem:[%s262 + $0x328] sm:$0xff]
        %v437 = vld [vmem:[%s262 + $0x330] sm:$0xff]
        %v438 = vld [vmem:[%s262 + $0x338] sm:$0xff]
        %v439 = vld [vmem:[%s262 + $0x340] sm:$0xff]
        %v440 = vld [vmem:[%s262 + $0x348] sm:$0xff]
        %v441 = vld [vmem:[%s262 + $0x350] sm:$0xff]
        %v442 = vld [vmem:[%s262 + $0x358] sm:$0xff]
        %v443 = vld [vmem:[%s262 + $0x360] sm:$0xff]
        %v444 = vld [vmem:[%s262 + $0x368] sm:$0xff]
        %v445 = vld [vmem:[%s262 + $0x370] sm:$0xff]
        %v446 = vld [vmem:[%s262 + $0x378] sm:$0xff]
        %v447 = vld [vmem:[%s262 + $0x380] sm:$0xff]
        %v448 = vld [vmem:[%s262 + $0x388] sm:$0xff]
        %v449 = vld [vmem:[%s262 + $0x390] sm:$0xff]
        %v450 = vld [vmem:[%s262 + $0x398] sm:$0xff]
        %v451 = vld [vmem:[%s262 + $0x3a0] sm:$0xff]
        %v452 = vld [vmem:[%s262 + $0x3a8] sm:$0xff]
        %v453 = vld [vmem:[%s262 + $0x3b0] sm:$0xff]
        %v454 = vld [vmem:[%s262 + $0x3b8] sm:$0xff]
        %v455 = vld [vmem:[%s262 + $0x3c0] sm:$0xff]
        %v456 = vld [vmem:[%s262 + $0x3c8] sm:$0xff]
        %v457 = vld [vmem:[%s262 + $0x3d0] sm:$0xff]
        %v458 = vld [vmem:[%s262 + $0x3d8] sm:$0xff]
        %v459 = vld [vmem:[%s262 + $0x3e0] sm:$0xff]
        %v460 = vld [vmem:[%s262 + $0x3e8] sm:$0xff]
        %v461 = vld [vmem:[%s262 + $0x3f0] sm:$0xff]
        %v462 = vld [vmem:[%s262 + $0x3f8] sm:$0xff]
        %v463 = vunpack.c.l.bf16 %v335
        %v464 = vunpack.c.h.bf16 %v335
        %v465 = vunpack.c.l.bf16 %v336
        %v466 = vunpack.c.h.bf16 %v336
        %v467 = vunpack.c.l.bf16 %v337
        %v468 = vunpack.c.h.bf16 %v337
        %v469 = vunpack.c.l.bf16 %v338
        %v470 = vunpack.c.h.bf16 %v338
        %v471 = vunpack.c.l.bf16 %v339
        %v472 = vunpack.c.h.bf16 %v339
        %v473 = vunpack.c.l.bf16 %v340
        %v474 = vunpack.c.h.bf16 %v340
        %v475 = vunpack.c.l.bf16 %v341
        %v476 = vunpack.c.h.bf16 %v341
        %v477 = vunpack.c.l.bf16 %v342
        %v478 = vunpack.c.h.bf16 %v342
        %v479 = vunpack.c.l.bf16 %v343
        %v480 = vunpack.c.h.bf16 %v343
        %v481 = vunpack.c.l.bf16 %v344
        %v482 = vunpack.c.h.bf16 %v344
        %v483 = vunpack.c.l.bf16 %v345
        %v484 = vunpack.c.h.bf16 %v345
        %v485 = vunpack.c.l.bf16 %v346
        %v486 = vunpack.c.h.bf16 %v346
        %v487 = vunpack.c.l.bf16 %v347
        %v488 = vunpack.c.h.bf16 %v347
        %v489 = vunpack.c.l.bf16 %v348
        %v490 = vunpack.c.h.bf16 %v348
        %v491 = vunpack.c.l.bf16 %v349
        %v492 = vunpack.c.h.bf16 %v349
        %v493 = vunpack.c.l.bf16 %v350
        %v494 = vunpack.c.h.bf16 %v350
        %v495 = vunpack.c.l.bf16 %v351
        %v496 = vunpack.c.h.bf16 %v351
        %v497 = vunpack.c.l.bf16 %v352
        %v498 = vunpack.c.h.bf16 %v352
        %v499 = vunpack.c.l.bf16 %v353
        %v500 = vunpack.c.h.bf16 %v353
        %v501 = vunpack.c.l.bf16 %v354
        %v502 = vunpack.c.h.bf16 %v354
        %v503 = vunpack.c.l.bf16 %v355
        %v504 = vunpack.c.h.bf16 %v355
        %v505 = vunpack.c.l.bf16 %v356
        %v506 = vunpack.c.h.bf16 %v356
        %v507 = vunpack.c.l.bf16 %v357
        %v508 = vunpack.c.h.bf16 %v357
        %v509 = vunpack.c.l.bf16 %v358
        %v510 = vunpack.c.h.bf16 %v358
        %v511 = vunpack.c.l.bf16 %v359
        %v512 = vunpack.c.h.bf16 %v359
        %v513 = vunpack.c.l.bf16 %v360
        %v514 = vunpack.c.h.bf16 %v360
        %v515 = vunpack.c.l.bf16 %v361
        %v516 = vunpack.c.h.bf16 %v361
        %v517 = vunpack.c.l.bf16 %v362
        %v518 = vunpack.c.h.bf16 %v362
        %v519 = vunpack.c.l.bf16 %v363
        %v520 = vunpack.c.h.bf16 %v363
        %v521 = vunpack.c.l.bf16 %v364
        %v522 = vunpack.c.h.bf16 %v364
        %v523 = vunpack.c.l.bf16 %v365
        %v524 = vunpack.c.h.bf16 %v365
        %v525 = vunpack.c.l.bf16 %v366
        %v526 = vunpack.c.h.bf16 %v366
        %v527 = vunpack.c.l.bf16 %v367
        %v528 = vunpack.c.h.bf16 %v367
        %v529 = vunpack.c.l.bf16 %v368
        %v530 = vunpack.c.h.bf16 %v368
        %v531 = vunpack.c.l.bf16 %v369
        %v532 = vunpack.c.h.bf16 %v369
        %v533 = vunpack.c.l.bf16 %v370
        %v534 = vunpack.c.h.bf16 %v370
        %v535 = vunpack.c.l.bf16 %v371
        %v536 = vunpack.c.h.bf16 %v371
        %v537 = vunpack.c.l.bf16 %v372
        %v538 = vunpack.c.h.bf16 %v372
        %v539 = vunpack.c.l.bf16 %v373
        %v540 = vunpack.c.h.bf16 %v373
        %v541 = vunpack.c.l.bf16 %v374
        %v542 = vunpack.c.h.bf16 %v374
        %v543 = vunpack.c.l.bf16 %v375
        %v544 = vunpack.c.h.bf16 %v375
        %v545 = vunpack.c.l.bf16 %v376
        %v546 = vunpack.c.h.bf16 %v376
        %v547 = vunpack.c.l.bf16 %v377
        %v548 = vunpack.c.h.bf16 %v377
        %v549 = vunpack.c.l.bf16 %v378
        %v550 = vunpack.c.h.bf16 %v378
        %v551 = vunpack.c.l.bf16 %v379
        %v552 = vunpack.c.h.bf16 %v379
        %v553 = vunpack.c.l.bf16 %v380
        %v554 = vunpack.c.h.bf16 %v380
        %v555 = vunpack.c.l.bf16 %v381
        %v556 = vunpack.c.h.bf16 %v381
        %v557 = vunpack.c.l.bf16 %v382
        %v558 = vunpack.c.h.bf16 %v382
        %v559 = vunpack.c.l.bf16 %v383
        %v560 = vunpack.c.h.bf16 %v383
        %v561 = vunpack.c.l.bf16 %v384
        %v562 = vunpack.c.h.bf16 %v384
        %v563 = vunpack.c.l.bf16 %v385
        %v564 = vunpack.c.h.bf16 %v385
        %v565 = vunpack.c.l.bf16 %v386
        %v566 = vunpack.c.h.bf16 %v386
        %v567 = vunpack.c.l.bf16 %v387
        %v568 = vunpack.c.h.bf16 %v387
        %v569 = vunpack.c.l.bf16 %v388
        %v570 = vunpack.c.h.bf16 %v388
        %v571 = vunpack.c.l.bf16 %v389
        %v572 = vunpack.c.h.bf16 %v389
        %v573 = vunpack.c.l.bf16 %v390
        %v574 = vunpack.c.h.bf16 %v390
        %v575 = vunpack.c.l.bf16 %v391
        %v576 = vunpack.c.h.bf16 %v391
        %v577 = vunpack.c.l.bf16 %v392
        %v578 = vunpack.c.h.bf16 %v392
        %v579 = vunpack.c.l.bf16 %v393
        %v580 = vunpack.c.h.bf16 %v393
        %v581 = vunpack.c.l.bf16 %v394
        %v582 = vunpack.c.h.bf16 %v394
        %v583 = vunpack.c.l.bf16 %v395
        %v584 = vunpack.c.h.bf16 %v395
        %v585 = vunpack.c.l.bf16 %v396
        %v586 = vunpack.c.h.bf16 %v396
        %v587 = vunpack.c.l.bf16 %v397
        %v588 = vunpack.c.h.bf16 %v397
        %v589 = vunpack.c.l.bf16 %v398
        %v590 = vunpack.c.h.bf16 %v398
        %v591 = vunpack.c.l.bf16 %v399
        %v592 = vunpack.c.h.bf16 %v399
        %v593 = vunpack.c.l.bf16 %v400
        %v594 = vunpack.c.h.bf16 %v400
        %v595 = vunpack.c.l.bf16 %v401
        %v596 = vunpack.c.h.bf16 %v401
        %v597 = vunpack.c.l.bf16 %v402
        %v598 = vunpack.c.h.bf16 %v402
        %v599 = vunpack.c.l.bf16 %v403
        %v600 = vunpack.c.h.bf16 %v403
        %v601 = vunpack.c.l.bf16 %v404
        %v602 = vunpack.c.h.bf16 %v404
        %v603 = vunpack.c.l.bf16 %v405
        %v604 = vunpack.c.h.bf16 %v405
        %v605 = vunpack.c.l.bf16 %v406
        %v606 = vunpack.c.h.bf16 %v406
        %v607 = vunpack.c.l.bf16 %v407
        %v608 = vunpack.c.h.bf16 %v407
        %v609 = vunpack.c.l.bf16 %v408
        %v610 = vunpack.c.h.bf16 %v408
        %v611 = vunpack.c.l.bf16 %v409
        %v612 = vunpack.c.h.bf16 %v409
        %v613 = vunpack.c.l.bf16 %v410
        %v614 = vunpack.c.h.bf16 %v410
        %v615 = vunpack.c.l.bf16 %v411
        %v616 = vunpack.c.h.bf16 %v411
        %v617 = vunpack.c.l.bf16 %v412
        %v618 = vunpack.c.h.bf16 %v412
        %v619 = vunpack.c.l.bf16 %v413
        %v620 = vunpack.c.h.bf16 %v413
        %v621 = vunpack.c.l.bf16 %v414
        %v622 = vunpack.c.h.bf16 %v414
        %v623 = vunpack.c.l.bf16 %v415
        %v624 = vunpack.c.h.bf16 %v415
        %v625 = vunpack.c.l.bf16 %v416
        %v626 = vunpack.c.h.bf16 %v416
        %v627 = vunpack.c.l.bf16 %v417
        %v628 = vunpack.c.h.bf16 %v417
        %v629 = vunpack.c.l.bf16 %v418
        %v630 = vunpack.c.h.bf16 %v418
        %v631 = vunpack.c.l.bf16 %v419
        %v632 = vunpack.c.h.bf16 %v419
        %v633 = vunpack.c.l.bf16 %v420
        %v634 = vunpack.c.h.bf16 %v420
        %v635 = vunpack.c.l.bf16 %v421
        %v636 = vunpack.c.h.bf16 %v421
        %v637 = vunpack.c.l.bf16 %v422
        %v638 = vunpack.c.h.bf16 %v422
        %v639 = vunpack.c.l.bf16 %v423
        %v640 = vunpack.c.h.bf16 %v423
        %v641 = vunpack.c.l.bf16 %v424
        %v642 = vunpack.c.h.bf16 %v424
        %v643 = vunpack.c.l.bf16 %v425
        %v644 = vunpack.c.h.bf16 %v425
        %v645 = vunpack.c.l.bf16 %v426
        %v646 = vunpack.c.h.bf16 %v426
        %v647 = vunpack.c.l.bf16 %v427
        %v648 = vunpack.c.h.bf16 %v427
        %v649 = vunpack.c.l.bf16 %v428
        %v650 = vunpack.c.h.bf16 %v428
        %v651 = vunpack.c.l.bf16 %v429
        %v652 = vunpack.c.h.bf16 %v429
        %v653 = vunpack.c.l.bf16 %v430
        %v654 = vunpack.c.h.bf16 %v430
        %v655 = vunpack.c.l.bf16 %v431
        %v656 = vunpack.c.h.bf16 %v431
        %v657 = vunpack.c.l.bf16 %v432
        %v658 = vunpack.c.h.bf16 %v432
        %v659 = vunpack.c.l.bf16 %v433
        %v660 = vunpack.c.h.bf16 %v433
        %v661 = vunpack.c.l.bf16 %v434
        %v662 = vunpack.c.h.bf16 %v434
        %v663 = vunpack.c.l.bf16 %v435
        %v664 = vunpack.c.h.bf16 %v435
        %v665 = vunpack.c.l.bf16 %v436
        %v666 = vunpack.c.h.bf16 %v436
        %v667 = vunpack.c.l.bf16 %v437
        %v668 = vunpack.c.h.bf16 %v437
        %v669 = vunpack.c.l.bf16 %v438
        %v670 = vunpack.c.h.bf16 %v438
        %v671 = vunpack.c.l.bf16 %v439
        %v672 = vunpack.c.h.bf16 %v439
        %v673 = vunpack.c.l.bf16 %v440
        %v674 = vunpack.c.h.bf16 %v440
        %v675 = vunpack.c.l.bf16 %v441
        %v676 = vunpack.c.h.bf16 %v441
        %v677 = vunpack.c.l.bf16 %v442
        %v678 = vunpack.c.h.bf16 %v442
        %v679 = vunpack.c.l.bf16 %v443
        %v680 = vunpack.c.h.bf16 %v443
        %v681 = vunpack.c.l.bf16 %v444
        %v682 = vunpack.c.h.bf16 %v444
        %v683 = vunpack.c.l.bf16 %v445
        %v684 = vunpack.c.h.bf16 %v445
        %v685 = vunpack.c.l.bf16 %v446
        %v686 = vunpack.c.h.bf16 %v446
        %v687 = vunpack.c.l.bf16 %v447
        %v688 = vunpack.c.h.bf16 %v447
        %v689 = vunpack.c.l.bf16 %v448
        %v690 = vunpack.c.h.bf16 %v448
        %v691 = vunpack.c.l.bf16 %v449
        %v692 = vunpack.c.h.bf16 %v449
        %v693 = vunpack.c.l.bf16 %v450
        %v694 = vunpack.c.h.bf16 %v450
        %v695 = vunpack.c.l.bf16 %v451
        %v696 = vunpack.c.h.bf16 %v451
        %v697 = vunpack.c.l.bf16 %v452
        %v698 = vunpack.c.h.bf16 %v452
        %v699 = vunpack.c.l.bf16 %v453
        %v700 = vunpack.c.h.bf16 %v453
        %v701 = vunpack.c.l.bf16 %v454
        %v702 = vunpack.c.h.bf16 %v454
        %v703 = vunpack.c.l.bf16 %v455
        %v704 = vunpack.c.h.bf16 %v455
        %v705 = vunpack.c.l.bf16 %v456
        %v706 = vunpack.c.h.bf16 %v456
        %v707 = vunpack.c.l.bf16 %v457
        %v708 = vunpack.c.h.bf16 %v457
        %v709 = vunpack.c.l.bf16 %v458
        %v710 = vunpack.c.h.bf16 %v458
        %v711 = vunpack.c.l.bf16 %v459
        %v712 = vunpack.c.h.bf16 %v459
        %v713 = vunpack.c.l.bf16 %v460
        %v714 = vunpack.c.h.bf16 %v460
        %v715 = vunpack.c.l.bf16 %v461
        %v716 = vunpack.c.h.bf16 %v461
        %v717 = vunpack.c.l.bf16 %v462
        %v718 = vunpack.c.h.bf16 %v462
        %v719 = vld [vmem:[%s271] sm:$0xf]
        %v720 = vld [vmem:[#allocation2] sm:$0xff]
        %v721 = vld [vmem:[#allocation2 + $0x8] sm:$0xff]
        %v722 = vld [vmem:[#allocation2 + $0x10] sm:$0xff]
        %v723 = vld [vmem:[#allocation2 + $0x18] sm:$0xff]
        %724 = vmatprep.subr.mxu0 %v524
        %725 = vmatpush1.msra.mxu0 %v523
        %726 = vmatprep.subr.mxu0 %v520
        %727 = vmatpush1.msra.mxu0 %v519
        %728 = vmatprep.subr.mxu0 %v516
        %729 = vmatpush1.msra.mxu0 %v515
        %730 = vmatprep.subr.mxu0 %v512
        %731 = vmatpush1.msra.mxu0 %v511
        %732 = vmatprep.subr.mxu0 %v508
        %733 = vmatpush1.msra.mxu0 %v507
        %734 = vmatprep.subr.mxu0 %v504
        %735 = vmatpush1.msra.mxu0 %v503
        %736 = vmatprep.subr.mxu0 %v500
        %737 = vmatpush1.msra.mxu0 %v499
        %738 = vmatprep.subr.mxu0 %v496
        %739 = vmatpush1.msra.mxu0 %v495
        %740 = vmatprep.subr.mxu0 %v492
        %741 = vmatpush1.msra.mxu0 %v491
        %742 = vmatprep.subr.mxu0 %v488
        %743 = vmatpush1.msra.mxu0 %v487
        %744 = vmatprep.subr.mxu0 %v484
        %745 = vmatpush1.msra.mxu0 %v483
        %746 = vmatprep.subr.mxu0 %v480
        %747 = vmatpush1.msra.mxu0 %v479
        %748 = vmatprep.subr.mxu0 %v476
        %749 = vmatpush1.msra.mxu0 %v475
        %750 = vmatprep.subr.mxu0 %v472
        %751 = vmatpush1.msra.mxu0 %v471
        %752 = vmatprep.subr.mxu0 %v468
        %753 = vmatpush1.msra.mxu0 %v467
        %754 = vmatprep.subr.mxu0 %v464
        %755 = vmatpush1.msra.mxu0 %v463
        %756 = vmatprep.subr.mxu0 %v588
        %757 = vmatpush2.msra.mxu0 %v587
        %758 = vmatprep.subr.mxu0 %v584
        %759 = vmatpush2.msra.mxu0 %v583
        %760 = vmatprep.subr.mxu0 %v580
        %761 = vmatpush2.msra.mxu0 %v579
        %762 = vmatprep.subr.mxu0 %v576
        %763 = vmatpush2.msra.mxu0 %v575
        %764 = vmatprep.subr.mxu0 %v572
        %765 = vmatpush2.msra.mxu0 %v571
        %766 = vmatprep.subr.mxu0 %v568
        %767 = vmatpush2.msra.mxu0 %v567
        %768 = vmatprep.subr.mxu0 %v564
        %769 = vmatpush2.msra.mxu0 %v563
        %770 = vmatprep.subr.mxu0 %v560
        %771 = vmatpush2.msra.mxu0 %v559
        %772 = vmatprep.subr.mxu0 %v556
        %773 = vmatpush2.msra.mxu0 %v555
        %774 = vmatprep.subr.mxu0 %v552
        %775 = vmatpush2.msra.mxu0 %v551
        %776 = vmatprep.subr.mxu0 %v548
        %777 = vmatpush2.msra.mxu0 %v547
        %778 = vmatprep.subr.mxu0 %v544
        %779 = vmatpush2.msra.mxu0 %v543
        %780 = vmatprep.subr.mxu0 %v540
        %781 = vmatpush2.msra.mxu0 %v539
        %782 = vmatprep.subr.mxu0 %v536
        %783 = vmatpush2.msra.mxu0 %v535
        %784 = vmatprep.subr.mxu0 %v532
        %785 = vmatpush2.msra.mxu0 %v531
        %786 = vmatprep.subr.mxu0 %v528
        %787 = vmatpush2.msra.mxu0 %v527
        %788 = vmatprep.mubr.f32.mxu0 %v721
        %789 = vmatmul.mubr.f32.gmra.mxu0 %v720
        %v790 = vpop.f32.mrf.mxu0
        %v791 = vadd.f32 0.0, %v790
        %v792 = vpop.f32.mrf.mxu0
        %v793 = vadd.f32 0.0, %v792
        %794 = vdwg.mxu0
        %795 = vmatprep.subr.mxu0 %v652
        %796 = vmatpush1.msra.mxu0 %v651
        %797 = vmatprep.subr.mxu0 %v648
        %798 = vmatpush1.msra.mxu0 %v647
        %799 = vmatprep.subr.mxu0 %v644
        %800 = vmatpush1.msra.mxu0 %v643
        %801 = vmatprep.subr.mxu0 %v640
        %802 = vmatpush1.msra.mxu0 %v639
        %803 = vmatprep.subr.mxu0 %v636
        %804 = vmatpush1.msra.mxu0 %v635
        %805 = vmatprep.subr.mxu0 %v632
        %806 = vmatpush1.msra.mxu0 %v631
        %807 = vmatprep.subr.mxu0 %v628
        %808 = vmatpush1.msra.mxu0 %v627
        %809 = vmatprep.subr.mxu0 %v624
        %810 = vmatpush1.msra.mxu0 %v623
        %811 = vmatprep.subr.mxu0 %v620
        %812 = vmatpush1.msra.mxu0 %v619
        %813 = vmatprep.subr.mxu0 %v616
        %814 = vmatpush1.msra.mxu0 %v615
        %815 = vmatprep.subr.mxu0 %v612
        %816 = vmatpush1.msra.mxu0 %v611
        %817 = vmatprep.subr.mxu0 %v608
        %818 = vmatpush1.msra.mxu0 %v607
        %819 = vmatprep.subr.mxu0 %v604
        %820 = vmatpush1.msra.mxu0 %v603
        %821 = vmatprep.subr.mxu0 %v600
        %822 = vmatpush1.msra.mxu0 %v599
        %823 = vmatprep.subr.mxu0 %v596
        %824 = vmatpush1.msra.mxu0 %v595
        %825 = vmatprep.subr.mxu0 %v592
        %826 = vmatpush1.msra.mxu0 %v591
        %827 = vmatprep.subr.mxu0 %v716
        %828 = vmatpush2.msra.mxu0 %v715
        %829 = vmatprep.subr.mxu0 %v712
        %830 = vmatpush2.msra.mxu0 %v711
        %831 = vmatprep.subr.mxu0 %v708
        %832 = vmatpush2.msra.mxu0 %v707
        %833 = vmatprep.subr.mxu0 %v704
        %834 = vmatpush2.msra.mxu0 %v703
        %835 = vmatprep.subr.mxu0 %v700
        %836 = vmatpush2.msra.mxu0 %v699
        %837 = vmatprep.subr.mxu0 %v696
        %838 = vmatpush2.msra.mxu0 %v695
        %839 = vmatprep.subr.mxu0 %v692
        %840 = vmatpush2.msra.mxu0 %v691
        %841 = vmatprep.subr.mxu0 %v688
        %842 = vmatpush2.msra.mxu0 %v687
        %843 = vmatprep.subr.mxu0 %v684
        %844 = vmatpush2.msra.mxu0 %v683
        %845 = vmatprep.subr.mxu0 %v680
        %846 = vmatpush2.msra.mxu0 %v679
        %847 = vmatprep.subr.mxu0 %v676
        %848 = vmatpush2.msra.mxu0 %v675
        %849 = vmatprep.subr.mxu0 %v672
        %850 = vmatpush2.msra.mxu0 %v671
        %851 = vmatprep.subr.mxu0 %v668
        %852 = vmatpush2.msra.mxu0 %v667
        %853 = vmatprep.subr.mxu0 %v664
        %854 = vmatpush2.msra.mxu0 %v663
        %855 = vmatprep.subr.mxu0 %v660
        %856 = vmatpush2.msra.mxu0 %v659
        %857 = vmatprep.subr.mxu0 %v656
        %858 = vmatpush2.msra.mxu0 %v655
        %859 = vmatprep.mubr.f32.mxu0 %v723
        %860 = vmatmul.mubr.f32.gmra.mxu0 %v722
        %v861 = vpop.f32.mrf.mxu0
        %v862 = vadd.f32 %v791, %v861
        %v863 = vpop.f32.mrf.mxu0
        %v864 = vadd.f32 %v793, %v863
        %865 = vdwg.mxu0
        %866 = vmatprep.subr.mxu0 %v526
        %867 = vmatpush1.msra.mxu0 %v525
        %868 = vmatprep.subr.mxu0 %v522
        %869 = vmatpush1.msra.mxu0 %v521
        %870 = vmatprep.subr.mxu0 %v518
        %871 = vmatpush1.msra.mxu0 %v517
        %872 = vmatprep.subr.mxu0 %v514
        %873 = vmatpush1.msra.mxu0 %v513
        %874 = vmatprep.subr.mxu0 %v510
        %875 = vmatpush1.msra.mxu0 %v509
        %876 = vmatprep.subr.mxu0 %v506
        %877 = vmatpush1.msra.mxu0 %v505
        %878 = vmatprep.subr.mxu0 %v502
        %879 = vmatpush1.msra.mxu0 %v501
        %880 = vmatprep.subr.mxu0 %v498
        %881 = vmatpush1.msra.mxu0 %v497
        %882 = vmatprep.subr.mxu0 %v494
        %883 = vmatpush1.msra.mxu0 %v493
        %884 = vmatprep.subr.mxu0 %v490
        %885 = vmatpush1.msra.mxu0 %v489
        %886 = vmatprep.subr.mxu0 %v486
        %887 = vmatpush1.msra.mxu0 %v485
        %888 = vmatprep.subr.mxu0 %v482
        %889 = vmatpush1.msra.mxu0 %v481
        %890 = vmatprep.subr.mxu0 %v478
        %891 = vmatpush1.msra.mxu0 %v477
        %892 = vmatprep.subr.mxu0 %v474
        %893 = vmatpush1.msra.mxu0 %v473
        %894 = vmatprep.subr.mxu0 %v470
        %895 = vmatpush1.msra.mxu0 %v469
        %896 = vmatprep.subr.mxu0 %v466
        %897 = vmatpush1.msra.mxu0 %v465
        %898 = vmatprep.subr.mxu0 %v590
        %899 = vmatpush2.msra.mxu0 %v589
        %900 = vmatprep.subr.mxu0 %v586
        %901 = vmatpush2.msra.mxu0 %v585
        %902 = vmatprep.subr.mxu0 %v582
        %903 = vmatpush2.msra.mxu0 %v581
        %904 = vmatprep.subr.mxu0 %v578
        %905 = vmatpush2.msra.mxu0 %v577
        %906 = vmatprep.subr.mxu0 %v574
        %907 = vmatpush2.msra.mxu0 %v573
        %908 = vmatprep.subr.mxu0 %v570
        %909 = vmatpush2.msra.mxu0 %v569
        %910 = vmatprep.subr.mxu0 %v566
        %911 = vmatpush2.msra.mxu0 %v565
        %912 = vmatprep.subr.mxu0 %v562
        %913 = vmatpush2.msra.mxu0 %v561
        %914 = vmatprep.subr.mxu0 %v558
        %915 = vmatpush2.msra.mxu0 %v557
        %916 = vmatprep.subr.mxu0 %v554
        %917 = vmatpush2.msra.mxu0 %v553
        %918 = vmatprep.subr.mxu0 %v550
        %919 = vmatpush2.msra.mxu0 %v549
        %920 = vmatprep.subr.mxu0 %v546
        %921 = vmatpush2.msra.mxu0 %v545
        %922 = vmatprep.subr.mxu0 %v542
        %923 = vmatpush2.msra.mxu0 %v541
        %924 = vmatprep.subr.mxu0 %v538
        %925 = vmatpush2.msra.mxu0 %v537
        %926 = vmatprep.subr.mxu0 %v534
        %927 = vmatpush2.msra.mxu0 %v533
        %928 = vmatprep.subr.mxu0 %v530
        %929 = vmatpush2.msra.mxu0 %v529
        %930 = vmatprep.mubr.f32.mxu0 %v721
        %931 = vmatmul.mubr.f32.gmra.mxu0 %v720
        %v932 = vpop.f32.mrf.mxu0
        %v933 = vadd.f32 0.0, %v932
        %v934 = vpop.f32.mrf.mxu0
        %v935 = vadd.f32 0.0, %v934
        %936 = vdwg.mxu0
        %937 = vmatprep.subr.mxu0 %v654
        %938 = vmatpush1.msra.mxu0 %v653
        %939 = vmatprep.subr.mxu0 %v650
        %940 = vmatpush1.msra.mxu0 %v649
        %941 = vmatprep.subr.mxu0 %v646
        %942 = vmatpush1.msra.mxu0 %v645
        %943 = vmatprep.subr.mxu0 %v642
        %944 = vmatpush1.msra.mxu0 %v641
        %945 = vmatprep.subr.mxu0 %v638
        %946 = vmatpush1.msra.mxu0 %v637
        %947 = vmatprep.subr.mxu0 %v634
        %948 = vmatpush1.msra.mxu0 %v633
        %949 = vmatprep.subr.mxu0 %v630
        %950 = vmatpush1.msra.mxu0 %v629
        %951 = vmatprep.subr.mxu0 %v626
        %952 = vmatpush1.msra.mxu0 %v625
        %953 = vmatprep.subr.mxu0 %v622
        %954 = vmatpush1.msra.mxu0 %v621
        %955 = vmatprep.subr.mxu0 %v618
        %956 = vmatpush1.msra.mxu0 %v617
        %957 = vmatprep.subr.mxu0 %v614
        %958 = vmatpush1.msra.mxu0 %v613
        %959 = vmatprep.subr.mxu0 %v610
        %960 = vmatpush1.msra.mxu0 %v609
        %961 = vmatprep.subr.mxu0 %v606
        %962 = vmatpush1.msra.mxu0 %v605
        %963 = vmatprep.subr.mxu0 %v602
        %964 = vmatpush1.msra.mxu0 %v601
        %965 = vmatprep.subr.mxu0 %v598
        %966 = vmatpush1.msra.mxu0 %v597
        %967 = vmatprep.subr.mxu0 %v594
        %968 = vmatpush1.msra.mxu0 %v593
        %969 = vmatprep.subr.mxu0 %v718
        %970 = vmatpush2.msra.mxu0 %v717
        %971 = vmatprep.subr.mxu0 %v714
        %972 = vmatpush2.msra.mxu0 %v713
        %973 = vmatprep.subr.mxu0 %v710
        %974 = vmatpush2.msra.mxu0 %v709
        %975 = vmatprep.subr.mxu0 %v706
        %976 = vmatpush2.msra.mxu0 %v705
        %977 = vmatprep.subr.mxu0 %v702
        %978 = vmatpush2.msra.mxu0 %v701
        %979 = vmatprep.subr.mxu0 %v698
        %980 = vmatpush2.msra.mxu0 %v697
        %981 = vmatprep.subr.mxu0 %v694
        %982 = vmatpush2.msra.mxu0 %v693
        %983 = vmatprep.subr.mxu0 %v690
        %984 = vmatpush2.msra.mxu0 %v689
        %985 = vmatprep.subr.mxu0 %v686
        %986 = vmatpush2.msra.mxu0 %v685
        %987 = vmatprep.subr.mxu0 %v682
        %988 = vmatpush2.msra.mxu0 %v681
        %989 = vmatprep.subr.mxu0 %v678
        %990 = vmatpush2.msra.mxu0 %v677
        %991 = vmatprep.subr.mxu0 %v674
        %992 = vmatpush2.msra.mxu0 %v673
        %993 = vmatprep.subr.mxu0 %v670
        %994 = vmatpush2.msra.mxu0 %v669
        %995 = vmatprep.subr.mxu0 %v666
        %996 = vmatpush2.msra.mxu0 %v665
        %997 = vmatprep.subr.mxu0 %v662
        %998 = vmatpush2.msra.mxu0 %v661
        %999 = vmatprep.subr.mxu0 %v658
        %1000 = vmatpush2.msra.mxu0 %v657
        %1001 = vmatprep.mubr.f32.mxu0 %v723
        %1002 = vmatmul.mubr.f32.gmra.mxu0 %v722
        %v1003 = vpop.f32.mrf.mxu0
        %v1004 = vadd.f32 %v933, %v1003
        %v1005 = vpop.f32.mrf.mxu0
        %v1006 = vadd.f32 %v935, %v1005
        %1007 = vdwg.mxu0
        %v1008 = vmul.f32 %v862, 0.000625
        %v1009 = vmul.f32 %v864, 0.000625
        %v1010 = vmul.f32 %v1004, 0.000625
        %v1011 = vmul.f32 %v1006, 0.000625
        %v1012 = vmul.f32 %v719, 0.01
        %v1014 = vlaneseq
        %v1015 = vshrl.u32 %v1014, 7
        %v1016 = vsub.s32 0, %v1015
        %v1017 = vrot.slane %v1012, %v1016
        %v1018 = vlaneseq
        %v1019 = vshrl.u32 %v1018, 7
        %v1020 = vsub.s32 1, %v1019
        %v1021 = vrot.slane %v1012, %v1020
        %v1022 = vlaneseq
        %v1023 = vshrl.u32 %v1022, 7
        %v1024 = vsub.s32 2, %v1023
        %v1025 = vrot.slane %v1012, %v1024
        %v1026 = vlaneseq
        %v1027 = vshrl.u32 %v1026, 7
        %v1028 = vsub.s32 3, %v1027
        %v1029 = vrot.slane %v1012, %v1028
        %v1034 = vadd.f32 %v1008, %v1017
        %v1035 = vadd.f32 %v1009, %v1021
        %v1036 = vadd.f32 %v1010, %v1025
        %v1037 = vadd.f32 %v1011, %v1029
        %vm1038 = vcmp.ge.f32.partialorder %v1034, 0.0
        %vm1039 = vcmp.ge.f32.partialorder %v1035, 0.0
        %vm1040 = vcmp.ge.f32.partialorder %v1036, 0.0
        %vm1041 = vcmp.ge.f32.partialorder %v1037, 0.0
        %v1042 = vmul.f32 %v1034, 0.2
        %v1043 = vmul.f32 %v1035, 0.2
        %v1044 = vmul.f32 %v1036, 0.2
        %v1045 = vmul.f32 %v1037, 0.2
        %v1046 = vsel %vm1038, %v1034, %v1042
        %v1047 = vsel %vm1039, %v1035, %v1043
        %v1048 = vsel %vm1040, %v1036, %v1044
        %v1049 = vsel %vm1041, %v1037, %v1045
        %1050 = vst [vmem:[#allocation2] sm:$0xff] %v1046
        %1051 = vst [vmem:[#allocation2 + $0x8] sm:$0xff] %v1047
        %1052 = vst [vmem:[#allocation2 + $0x10] sm:$0xff] %v1048
        %1053 = vst [vmem:[#allocation2 + $0x18] sm:$0xff] %v1049
        %p1054 = scmp.eq.s32.totalorder %s22, 6
        // Predicated region
        $region65: #{tpu_custom_call.1} parent=39 // pred_check
          %p1055 = pneg %p1054
        $region66: #{tpu_custom_call.1} parent=39 // pred_check_branch
          %1057 = sbr.rel (%p1055) target = $region68
        $region67: #{tpu_custom_call.1} parent=39 // pred_region
          %v1058 = vld [vmem:[#allocation9] sm:$0xff]
          %v1059 = vld [vmem:[#allocation9 + $0x8] sm:$0xff]
          %v1060 = vld [vmem:[#allocation9 + $0x10] sm:$0xff]
          %v1061 = vld [vmem:[#allocation9 + $0x18] sm:$0xff]
          %v1062 = vld [vmem:[#allocation9 + $0x20] sm:$0xff]
          %v1063 = vld [vmem:[#allocation9 + $0x28] sm:$0xff]
          %v1064 = vld [vmem:[#allocation9 + $0x30] sm:$0xff]
          %v1065 = vld [vmem:[#allocation9 + $0x38] sm:$0xff]
          %v1066 = vld [vmem:[#allocation9 + $0x40] sm:$0xff]
          %v1067 = vld [vmem:[#allocation9 + $0x48] sm:$0xff]
          %v1068 = vld [vmem:[#allocation9 + $0x50] sm:$0xff]
          %v1069 = vld [vmem:[#allocation9 + $0x58] sm:$0xff]
          %v1070 = vld [vmem:[#allocation9 + $0x60] sm:$0xff]
          %v1071 = vld [vmem:[#allocation9 + $0x68] sm:$0xff]
          %v1072 = vld [vmem:[#allocation9 + $0x70] sm:$0xff]
          %v1073 = vld [vmem:[#allocation9 + $0x78] sm:$0xff]
          %v1074 = vld [vmem:[#allocation9 + $0x80] sm:$0xff]
          %v1075 = vld [vmem:[#allocation9 + $0x88] sm:$0xff]
          %v1076 = vld [vmem:[#allocation9 + $0x90] sm:$0xff]
          %v1077 = vld [vmem:[#allocation9 + $0x98] sm:$0xff]
          %v1078 = vld [vmem:[#allocation9 + $0xa0] sm:$0xff]
          %v1079 = vld [vmem:[#allocation9 + $0xa8] sm:$0xff]
          %v1080 = vld [vmem:[#allocation9 + $0xb0] sm:$0xff]
          %v1081 = vld [vmem:[#allocation9 + $0xb8] sm:$0xff]
          %v1082 = vld [vmem:[#allocation9 + $0xc0] sm:$0xff]
          %v1083 = vld [vmem:[#allocation9 + $0xc8] sm:$0xff]
          %v1084 = vld [vmem:[#allocation9 + $0xd0] sm:$0xff]
          %v1085 = vld [vmem:[#allocation9 + $0xd8] sm:$0xff]
          %v1086 = vld [vmem:[#allocation9 + $0xe0] sm:$0xff]
          %v1087 = vld [vmem:[#allocation9 + $0xe8] sm:$0xff]
          %v1088 = vld [vmem:[#allocation9 + $0xf0] sm:$0xff]
          %v1089 = vld [vmem:[#allocation9 + $0xf8] sm:$0xff]
          %v1090 = vld [vmem:[#allocation9 + $0x100] sm:$0xff]
          %v1091 = vld [vmem:[#allocation9 + $0x108] sm:$0xff]
          %v1092 = vld [vmem:[#allocation9 + $0x110] sm:$0xff]
          %v1093 = vld [vmem:[#allocation9 + $0x118] sm:$0xff]
          %v1094 = vld [vmem:[#allocation9 + $0x120] sm:$0xff]
          %v1095 = vld [vmem:[#allocation9 + $0x128] sm:$0xff]
          %v1096 = vld [vmem:[#allocation9 + $0x130] sm:$0xff]
          %v1097 = vld [vmem:[#allocation9 + $0x138] sm:$0xff]
          %v1098 = vld [vmem:[#allocation9 + $0x140] sm:$0xff]
          %v1099 = vld [vmem:[#allocation9 + $0x148] sm:$0xff]
          %v1100 = vld [vmem:[#allocation9 + $0x150] sm:$0xff]
          %v1101 = vld [vmem:[#allocation9 + $0x158] sm:$0xff]
          %v1102 = vld [vmem:[#allocation9 + $0x160] sm:$0xff]
          %v1103 = vld [vmem:[#allocation9 + $0x168] sm:$0xff]
          %v1104 = vld [vmem:[#allocation9 + $0x170] sm:$0xff]
          %v1105 = vld [vmem:[#allocation9 + $0x178] sm:$0xff]
          %v1106 = vld [vmem:[#allocation9 + $0x180] sm:$0xff]
          %v1107 = vld [vmem:[#allocation9 + $0x188] sm:$0xff]
          %v1108 = vld [vmem:[#allocation9 + $0x190] sm:$0xff]
          %v1109 = vld [vmem:[#allocation9 + $0x198] sm:$0xff]
          %v1110 = vld [vmem:[#allocation9 + $0x1a0] sm:$0xff]
          %v1111 = vld [vmem:[#allocation9 + $0x1a8] sm:$0xff]
          %v1112 = vld [vmem:[#allocation9 + $0x1b0] sm:$0xff]
          %v1113 = vld [vmem:[#allocation9 + $0x1b8] sm:$0xff]
          %v1114 = vld [vmem:[#allocation9 + $0x1c0] sm:$0xff]
          %v1115 = vld [vmem:[#allocation9 + $0x1c8] sm:$0xff]
          %v1116 = vld [vmem:[#allocation9 + $0x1d0] sm:$0xff]
          %v1117 = vld [vmem:[#allocation9 + $0x1d8] sm:$0xff]
          %v1118 = vld [vmem:[#allocation9 + $0x1e0] sm:$0xff]
          %v1119 = vld [vmem:[#allocation9 + $0x1e8] sm:$0xff]
          %v1120 = vld [vmem:[#allocation9 + $0x1f0] sm:$0xff]
          %v1121 = vld [vmem:[#allocation9 + $0x1f8] sm:$0xff]
          %v1122 = vunpack.c.l.bf16 %v1058
          %v1123 = vunpack.c.h.bf16 %v1058
          %v1124 = vunpack.c.l.bf16 %v1059
          %v1125 = vunpack.c.h.bf16 %v1059
          %v1126 = vunpack.c.l.bf16 %v1060
          %v1127 = vunpack.c.h.bf16 %v1060
          %v1128 = vunpack.c.l.bf16 %v1061
          %v1129 = vunpack.c.h.bf16 %v1061
          %v1130 = vunpack.c.l.bf16 %v1062
          %v1131 = vunpack.c.h.bf16 %v1062
          %v1132 = vunpack.c.l.bf16 %v1063
          %v1133 = vunpack.c.h.bf16 %v1063
          %v1134 = vunpack.c.l.bf16 %v1064
          %v1135 = vunpack.c.h.bf16 %v1064
          %v1136 = vunpack.c.l.bf16 %v1065
          %v1137 = vunpack.c.h.bf16 %v1065
          %v1138 = vunpack.c.l.bf16 %v1066
          %v1139 = vunpack.c.h.bf16 %v1066
          %v1140 = vunpack.c.l.bf16 %v1067
          %v1141 = vunpack.c.h.bf16 %v1067
          %v1142 = vunpack.c.l.bf16 %v1068
          %v1143 = vunpack.c.h.bf16 %v1068
          %v1144 = vunpack.c.l.bf16 %v1069
          %v1145 = vunpack.c.h.bf16 %v1069
          %v1146 = vunpack.c.l.bf16 %v1070
          %v1147 = vunpack.c.h.bf16 %v1070
          %v1148 = vunpack.c.l.bf16 %v1071
          %v1149 = vunpack.c.h.bf16 %v1071
          %v1150 = vunpack.c.l.bf16 %v1072
          %v1151 = vunpack.c.h.bf16 %v1072
          %v1152 = vunpack.c.l.bf16 %v1073
          %v1153 = vunpack.c.h.bf16 %v1073
          %v1154 = vunpack.c.l.bf16 %v1074
          %v1155 = vunpack.c.h.bf16 %v1074
          %v1156 = vunpack.c.l.bf16 %v1075
          %v1157 = vunpack.c.h.bf16 %v1075
          %v1158 = vunpack.c.l.bf16 %v1076
          %v1159 = vunpack.c.h.bf16 %v1076
          %v1160 = vunpack.c.l.bf16 %v1077
          %v1161 = vunpack.c.h.bf16 %v1077
          %v1162 = vunpack.c.l.bf16 %v1078
          %v1163 = vunpack.c.h.bf16 %v1078
          %v1164 = vunpack.c.l.bf16 %v1079
          %v1165 = vunpack.c.h.bf16 %v1079
          %v1166 = vunpack.c.l.bf16 %v1080
          %v1167 = vunpack.c.h.bf16 %v1080
          %v1168 = vunpack.c.l.bf16 %v1081
          %v1169 = vunpack.c.h.bf16 %v1081
          %v1170 = vunpack.c.l.bf16 %v1082
          %v1171 = vunpack.c.h.bf16 %v1082
          %v1172 = vunpack.c.l.bf16 %v1083
          %v1173 = vunpack.c.h.bf16 %v1083
          %v1174 = vunpack.c.l.bf16 %v1084
          %v1175 = vunpack.c.h.bf16 %v1084
          %v1176 = vunpack.c.l.bf16 %v1085
          %v1177 = vunpack.c.h.bf16 %v1085
          %v1178 = vunpack.c.l.bf16 %v1086
          %v1179 = vunpack.c.h.bf16 %v1086
          %v1180 = vunpack.c.l.bf16 %v1087
          %v1181 = vunpack.c.h.bf16 %v1087
          %v1182 = vunpack.c.l.bf16 %v1088
          %v1183 = vunpack.c.h.bf16 %v1088
          %v1184 = vunpack.c.l.bf16 %v1089
          %v1185 = vunpack.c.h.bf16 %v1089
          %v1186 = vunpack.c.l.bf16 %v1090
          %v1187 = vunpack.c.h.bf16 %v1090
          %v1188 = vunpack.c.l.bf16 %v1091
          %v1189 = vunpack.c.h.bf16 %v1091
          %v1190 = vunpack.c.l.bf16 %v1092
          %v1191 = vunpack.c.h.bf16 %v1092
          %v1192 = vunpack.c.l.bf16 %v1093
          %v1193 = vunpack.c.h.bf16 %v1093
          %v1194 = vunpack.c.l.bf16 %v1094
          %v1195 = vunpack.c.h.bf16 %v1094
          %v1196 = vunpack.c.l.bf16 %v1095
          %v1197 = vunpack.c.h.bf16 %v1095
          %v1198 = vunpack.c.l.bf16 %v1096
          %v1199 = vunpack.c.h.bf16 %v1096
          %v1200 = vunpack.c.l.bf16 %v1097
          %v1201 = vunpack.c.h.bf16 %v1097
          %v1202 = vunpack.c.l.bf16 %v1098
          %v1203 = vunpack.c.h.bf16 %v1098
          %v1204 = vunpack.c.l.bf16 %v1099
          %v1205 = vunpack.c.h.bf16 %v1099
          %v1206 = vunpack.c.l.bf16 %v1100
          %v1207 = vunpack.c.h.bf16 %v1100
          %v1208 = vunpack.c.l.bf16 %v1101
          %v1209 = vunpack.c.h.bf16 %v1101
          %v1210 = vunpack.c.l.bf16 %v1102
          %v1211 = vunpack.c.h.bf16 %v1102
          %v1212 = vunpack.c.l.bf16 %v1103
          %v1213 = vunpack.c.h.bf16 %v1103
          %v1214 = vunpack.c.l.bf16 %v1104
          %v1215 = vunpack.c.h.bf16 %v1104
          %v1216 = vunpack.c.l.bf16 %v1105
          %v1217 = vunpack.c.h.bf16 %v1105
          %v1218 = vunpack.c.l.bf16 %v1106
          %v1219 = vunpack.c.h.bf16 %v1106
          %v1220 = vunpack.c.l.bf16 %v1107
          %v1221 = vunpack.c.h.bf16 %v1107
          %v1222 = vunpack.c.l.bf16 %v1108
          %v1223 = vunpack.c.h.bf16 %v1108
          %v1224 = vunpack.c.l.bf16 %v1109
          %v1225 = vunpack.c.h.bf16 %v1109
          %v1226 = vunpack.c.l.bf16 %v1110
          %v1227 = vunpack.c.h.bf16 %v1110
          %v1228 = vunpack.c.l.bf16 %v1111
          %v1229 = vunpack.c.h.bf16 %v1111
          %v1230 = vunpack.c.l.bf16 %v1112
          %v1231 = vunpack.c.h.bf16 %v1112
          %v1232 = vunpack.c.l.bf16 %v1113
          %v1233 = vunpack.c.h.bf16 %v1113
          %v1234 = vunpack.c.l.bf16 %v1114
          %v1235 = vunpack.c.h.bf16 %v1114
          %v1236 = vunpack.c.l.bf16 %v1115
          %v1237 = vunpack.c.h.bf16 %v1115
          %v1238 = vunpack.c.l.bf16 %v1116
          %v1239 = vunpack.c.h.bf16 %v1116
          %v1240 = vunpack.c.l.bf16 %v1117
          %v1241 = vunpack.c.h.bf16 %v1117
          %v1242 = vunpack.c.l.bf16 %v1118
          %v1243 = vunpack.c.h.bf16 %v1118
          %v1244 = vunpack.c.l.bf16 %v1119
          %v1245 = vunpack.c.h.bf16 %v1119
          %v1246 = vunpack.c.l.bf16 %v1120
          %v1247 = vunpack.c.h.bf16 %v1120
          %v1248 = vunpack.c.l.bf16 %v1121
          %v1249 = vunpack.c.h.bf16 %v1121
          %v1250 = vld [vmem:[#allocation2] sm:$0xff]
          %v1251 = vld [vmem:[#allocation2 + $0x8] sm:$0xff]
          %v1252 = vld [vmem:[#allocation2 + $0x10] sm:$0xff]
          %v1253 = vld [vmem:[#allocation2 + $0x18] sm:$0xff]
          %1254 = vmatprep.subr.mxu0 %v1153
          %1255 = vmatpush1.msra.mxu0 %v1152
          %1256 = vmatprep.subr.mxu0 %v1151
          %1257 = vmatpush1.msra.mxu0 %v1150
          %1258 = vmatprep.subr.mxu0 %v1149
          %1259 = vmatpush1.msra.mxu0 %v1148
          %1260 = vmatprep.subr.mxu0 %v1147
          %1261 = vmatpush1.msra.mxu0 %v1146
          %1262 = vmatprep.subr.mxu0 %v1145
          %1263 = vmatpush1.msra.mxu0 %v1144
          %1264 = vmatprep.subr.mxu0 %v1143
          %1265 = vmatpush1.msra.mxu0 %v1142
          %1266 = vmatprep.subr.mxu0 %v1141
          %1267 = vmatpush1.msra.mxu0 %v1140
          %1268 = vmatprep.subr.mxu0 %v1139
          %1269 = vmatpush1.msra.mxu0 %v1138
          %1270 = vmatprep.subr.mxu0 %v1137
          %1271 = vmatpush1.msra.mxu0 %v1136
          %1272 = vmatprep.subr.mxu0 %v1135
          %1273 = vmatpush1.msra.mxu0 %v1134
          %1274 = vmatprep.subr.mxu0 %v1133
          %1275 = vmatpush1.msra.mxu0 %v1132
          %1276 = vmatprep.subr.mxu0 %v1131
          %1277 = vmatpush1.msra.mxu0 %v1130
          %1278 = vmatprep.subr.mxu0 %v1129
          %1279 = vmatpush1.msra.mxu0 %v1128
          %1280 = vmatprep.subr.mxu0 %v1127
          %1281 = vmatpush1.msra.mxu0 %v1126
          %1282 = vmatprep.subr.mxu0 %v1125
          %1283 = vmatpush1.msra.mxu0 %v1124
          %1284 = vmatprep.subr.mxu0 %v1123
          %1285 = vmatpush1.msra.mxu0 %v1122
          %1286 = vmatprep.subr.mxu0 %v1185
          %1287 = vmatpush2.msra.mxu0 %v1184
          %1288 = vmatprep.subr.mxu0 %v1183
          %1289 = vmatpush2.msra.mxu0 %v1182
          %1290 = vmatprep.subr.mxu0 %v1181
          %1291 = vmatpush2.msra.mxu0 %v1180
          %1292 = vmatprep.subr.mxu0 %v1179
          %1293 = vmatpush2.msra.mxu0 %v1178
          %1294 = vmatprep.subr.mxu0 %v1177
          %1295 = vmatpush2.msra.mxu0 %v1176
          %1296 = vmatprep.subr.mxu0 %v1175
          %1297 = vmatpush2.msra.mxu0 %v1174
          %1298 = vmatprep.subr.mxu0 %v1173
          %1299 = vmatpush2.msra.mxu0 %v1172
          %1300 = vmatprep.subr.mxu0 %v1171
          %1301 = vmatpush2.msra.mxu0 %v1170
          %1302 = vmatprep.subr.mxu0 %v1169
          %1303 = vmatpush2.msra.mxu0 %v1168
          %1304 = vmatprep.subr.mxu0 %v1167
          %1305 = vmatpush2.msra.mxu0 %v1166
          %1306 = vmatprep.subr.mxu0 %v1165
          %1307 = vmatpush2.msra.mxu0 %v1164
          %1308 = vmatprep.subr.mxu0 %v1163
          %1309 = vmatpush2.msra.mxu0 %v1162
          %1310 = vmatprep.subr.mxu0 %v1161
          %1311 = vmatpush2.msra.mxu0 %v1160
          %1312 = vmatprep.subr.mxu0 %v1159
          %1313 = vmatpush2.msra.mxu0 %v1158
          %1314 = vmatprep.subr.mxu0 %v1157
          %1315 = vmatpush2.msra.mxu0 %v1156
          %1316 = vmatprep.subr.mxu0 %v1155
          %1317 = vmatpush2.msra.mxu0 %v1154
          %1318 = vmatprep.mubr.f32.mxu0 %v1251
          %1319 = vmatmul.mubr.f32.gmra.mxu0 %v1250
          %v1320 = vpop.f32.mrf.mxu0
          %v1321 = vadd.f32 0.0, %v1320
          %v1322 = vpop.f32.mrf.mxu0
          %v1323 = vadd.f32 0.0, %v1322
          %1324 = vdwg.mxu0
          %1325 = vmatprep.subr.mxu0 %v1217
          %1326 = vmatpush1.msra.mxu0 %v1216
          %1327 = vmatprep.subr.mxu0 %v1215
          %1328 = vmatpush1.msra.mxu0 %v1214
          %1329 = vmatprep.subr.mxu0 %v1213
          %1330 = vmatpush1.msra.mxu0 %v1212
          %1331 = vmatprep.subr.mxu0 %v1211
          %1332 = vmatpush1.msra.mxu0 %v1210
          %1333 = vmatprep.subr.mxu0 %v1209
          %1334 = vmatpush1.msra.mxu0 %v1208
          %1335 = vmatprep.subr.mxu0 %v1207
          %1336 = vmatpush1.msra.mxu0 %v1206
          %1337 = vmatprep.subr.mxu0 %v1205
          %1338 = vmatpush1.msra.mxu0 %v1204
          %1339 = vmatprep.subr.mxu0 %v1203
          %1340 = vmatpush1.msra.mxu0 %v1202
          %1341 = vmatprep.subr.mxu0 %v1201
          %1342 = vmatpush1.msra.mxu0 %v1200
          %1343 = vmatprep.subr.mxu0 %v1199
          %1344 = vmatpush1.msra.mxu0 %v1198
          %1345 = vmatprep.subr.mxu0 %v1197
          %1346 = vmatpush1.msra.mxu0 %v1196
          %1347 = vmatprep.subr.mxu0 %v1195
          %1348 = vmatpush1.msra.mxu0 %v1194
          %1349 = vmatprep.subr.mxu0 %v1193
          %1350 = vmatpush1.msra.mxu0 %v1192
          %1351 = vmatprep.subr.mxu0 %v1191
          %1352 = vmatpush1.msra.mxu0 %v1190
          %1353 = vmatprep.subr.mxu0 %v1189
          %1354 = vmatpush1.msra.mxu0 %v1188
          %1355 = vmatprep.subr.mxu0 %v1187
          %1356 = vmatpush1.msra.mxu0 %v1186
          %1357 = vmatprep.subr.mxu0 %v1249
          %1358 = vmatpush2.msra.mxu0 %v1248
          %1359 = vmatprep.subr.mxu0 %v1247
          %1360 = vmatpush2.msra.mxu0 %v1246
          %1361 = vmatprep.subr.mxu0 %v1245
          %1362 = vmatpush2.msra.mxu0 %v1244
          %1363 = vmatprep.subr.mxu0 %v1243
          %1364 = vmatpush2.msra.mxu0 %v1242
          %1365 = vmatprep.subr.mxu0 %v1241
          %1366 = vmatpush2.msra.mxu0 %v1240
          %1367 = vmatprep.subr.mxu0 %v1239
          %1368 = vmatpush2.msra.mxu0 %v1238
          %1369 = vmatprep.subr.mxu0 %v1237
          %1370 = vmatpush2.msra.mxu0 %v1236
          %1371 = vmatprep.subr.mxu0 %v1235
          %1372 = vmatpush2.msra.mxu0 %v1234
          %1373 = vmatprep.subr.mxu0 %v1233
          %1374 = vmatpush2.msra.mxu0 %v1232
          %1375 = vmatprep.subr.mxu0 %v1231
          %1376 = vmatpush2.msra.mxu0 %v1230
          %1377 = vmatprep.subr.mxu0 %v1229
          %1378 = vmatpush2.msra.mxu0 %v1228
          %1379 = vmatprep.subr.mxu0 %v1227
          %1380 = vmatpush2.msra.mxu0 %v1226
          %1381 = vmatprep.subr.mxu0 %v1225
          %1382 = vmatpush2.msra.mxu0 %v1224
          %1383 = vmatprep.subr.mxu0 %v1223
          %1384 = vmatpush2.msra.mxu0 %v1222
          %1385 = vmatprep.subr.mxu0 %v1221
          %1386 = vmatpush2.msra.mxu0 %v1220
          %1387 = vmatprep.subr.mxu0 %v1219
          %1388 = vmatpush2.msra.mxu0 %v1218
          %1389 = vmatprep.mubr.f32.mxu0 %v1253
          %1390 = vmatmul.mubr.f32.gmra.mxu0 %v1252
          %v1391 = vpop.f32.mrf.mxu0
          %v1392 = vadd.f32 %v1321, %v1391
          %v1393 = vpop.f32.mrf.mxu0
          %v1394 = vadd.f32 %v1323, %v1393
          %1395 = vdwg.mxu0
          %v1396 = vmul.f32 %v1392, 0.000625
          %v1397 = vmul.f32 %v1394, 0.000625
          %v1398 = vld [vmem:[#allocation11] sm:$0x3]
          %v1399 = vmul.f32 %v1398, 0.01
          %v1401 = vlaneseq
          %v1402 = vshrl.u32 %v1401, 7
          %v1403 = vsub.s32 0, %v1402
          %v1404 = vrot.slane %v1399, %v1403
          %v1405 = vlaneseq
          %v1406 = vshrl.u32 %v1405, 7
          %v1407 = vsub.s32 1, %v1406
          %v1408 = vrot.slane %v1399, %v1407
          %v1411 = vadd.f32 %v1396, %v1404
          %v1412 = vadd.f32 %v1397, %v1408
          %vm1413 = vcmp.ge.f32.partialorder %v1411, 0.0
          %vm1414 = vcmp.ge.f32.partialorder %v1412, 0.0
          %v1415 = vmul.f32 %v1411, 0.2
          %v1416 = vmul.f32 %v1412, 0.2
          %v1417 = vsel %vm1413, %v1411, %v1415
          %v1418 = vsel %vm1414, %v1412, %v1416
          %v1420 = vcombine.high %v1417, %v1417
          %v1422 = vunpack.c.l.s4 1966171168
          %v1423 = vunpack.c.0.s8 %v1422
          %v1424 = vlaneseq
          %v1425 = vshrl.u32 %v1424, 7
          %v1426 = vsub.s32 %v1423, %v1425
          %v1427 = vrot.slane %v1417, %v1426
          %v1429 = vunpack.c.l.s4 1966171168
          %v1430 = vunpack.c.0.s8 %v1429
          %v1431 = vlaneseq
          %v1432 = vshrl.u32 %v1431, 7
          %v1433 = vsub.s32 %v1430, %v1432
          %v1434 = vrot.slane %v1420, %v1433
          %v1435 = vcombine.high %v1427, %v1427
          %v1436 = vcombine.high %v1434, %v1434
          %v1438 = vunpack.c.l.s4 1966171168
          %v1439 = vunpack.c.0.s8 %v1438
          %v1440 = vlaneseq
          %v1441 = vshrl.u32 %v1440, 7
          %v1442 = vsub.s32 %v1439, %v1441
          %v1443 = vrot.slane %v1427, %v1442
          %v1445 = vunpack.c.l.s4 1966171168
          %v1446 = vunpack.c.0.s8 %v1445
          %v1447 = vlaneseq
          %v1448 = vshrl.u32 %v1447, 7
          %v1449 = vsub.s32 %v1446, %v1448
          %v1450 = vrot.slane %v1434, %v1449
          %v1452 = vunpack.c.l.s4 1966171168
          %v1453 = vunpack.c.0.s8 %v1452
          %v1454 = vlaneseq
          %v1455 = vshrl.u32 %v1454, 7
          %v1456 = vsub.s32 %v1453, %v1455
          %v1457 = vrot.slane %v1435, %v1456
          %v1459 = vunpack.c.l.s4 1966171168
          %v1460 = vunpack.c.0.s8 %v1459
          %v1461 = vlaneseq
          %v1462 = vshrl.u32 %v1461, 7
          %v1463 = vsub.s32 %v1460, %v1462
          %v1464 = vrot.slane %v1436, %v1463
          %v1465 = vcombine.high %v1443, %v1443
          %v1466 = vcombine.high %v1450, %v1450
          %v1467 = vcombine.high %v1457, %v1457
          %v1468 = vcombine.high %v1464, %v1464
          %1477 = vst [vmem:[#allocation12] sm:$0x1] %v1443
          %1478 = vst [vmem:[#allocation12 + $0x2] sm:$0x1] %v1457
          %1479 = vst [vmem:[#allocation12 + $0x4] sm:$0x1] %v1465
          %1480 = vst [vmem:[#allocation12 + $0x6] sm:$0x1] %v1467
          %1481 = vst [vmem:[#allocation12 + $0x8] sm:$0x1] %v1450
          %1482 = vst [vmem:[#allocation12 + $0xa] sm:$0x1] %v1464
          %1483 = vst [vmem:[#allocation12 + $0xc] sm:$0x1] %v1466
          %1484 = vst [vmem:[#allocation12 + $0xe] sm:$0x1] %v1468
          %v1486 = vcombine.high %v1418, %v1418
          %v1488 = vunpack.c.l.s4 1966171168
          %v1489 = vunpack.c.0.s8 %v1488
          %v1490 = vlaneseq
          %v1491 = vshrl.u32 %v1490, 7
          %v1492 = vsub.s32 %v1489, %v1491
          %v1493 = vrot.slane %v1418, %v1492
          %v1495 = vunpack.c.l.s4 1966171168
          %v1496 = vunpack.c.0.s8 %v1495
          %v1497 = vlaneseq
          %v1498 = vshrl.u32 %v1497, 7
          %v1499 = vsub.s32 %v1496, %v1498
          %v1500 = vrot.slane %v1486, %v1499
          %v1501 = vcombine.high %v1493, %v1493
          %v1502 = vcombine.high %v1500, %v1500
          %v1504 = vunpack.c.l.s4 1966171168
          %v1505 = vunpack.c.0.s8 %v1504
          %v1506 = vlaneseq
          %v1507 = vshrl.u32 %v1506, 7
          %v1508 = vsub.s32 %v1505, %v1507
          %v1509 = vrot.slane %v1493, %v1508
          %v1511 = vunpack.c.l.s4 1966171168
          %v1512 = vunpack.c.0.s8 %v1511
          %v1513 = vlaneseq
          %v1514 = vshrl.u32 %v1513, 7
          %v1515 = vsub.s32 %v1512, %v1514
          %v1516 = vrot.slane %v1500, %v1515
          %v1518 = vunpack.c.l.s4 1966171168
          %v1519 = vunpack.c.0.s8 %v1518
          %v1520 = vlaneseq
          %v1521 = vshrl.u32 %v1520, 7
          %v1522 = vsub.s32 %v1519, %v1521
          %v1523 = vrot.slane %v1501, %v1522
          %v1525 = vunpack.c.l.s4 1966171168
          %v1526 = vunpack.c.0.s8 %v1525
          %v1527 = vlaneseq
          %v1528 = vshrl.u32 %v1527, 7
          %v1529 = vsub.s32 %v1526, %v1528
          %v1530 = vrot.slane %v1502, %v1529
          %v1531 = vcombine.high %v1509, %v1509
          %v1532 = vcombine.high %v1516, %v1516
          %v1533 = vcombine.high %v1523, %v1523
          %v1534 = vcombine.high %v1530, %v1530
          %1543 = vst [vmem:[#allocation12 + $0x1] sm:$0x1] %v1509
          %1544 = vst [vmem:[#allocation12 + $0x3] sm:$0x1] %v1523
          %1545 = vst [vmem:[#allocation12 + $0x5] sm:$0x1] %v1531
          %1546 = vst [vmem:[#allocation12 + $0x7] sm:$0x1] %v1533
          %1547 = vst [vmem:[#allocation12 + $0x9] sm:$0x1] %v1516
          %1548 = vst [vmem:[#allocation12 + $0xb] sm:$0x1] %v1530
          %1549 = vst [vmem:[#allocation12 + $0xd] sm:$0x1] %v1532
          %1550 = vst [vmem:[#allocation12 + $0xf] sm:$0x1] %v1534
        $region68: #{tpu_custom_call.1} parent=39 // pred_fallthru
          _
        // Predicated region
        $region69: #{tpu_custom_call.1} parent=39 // pred_check
          %p1551 = pneg %p150
        $region70: #{tpu_custom_call.1} parent=39 // pred_check_branch
          %1553 = sbr.rel (%p1551) target = $region72
        $region71: #{tpu_custom_call.1} parent=39 // pred_region
          %s1555 = ssub.s32 256, 256
          %1556 = vsyncadd [#allocation5], %s1555
          %s1557 = sshll.u32 [#allocation12], 4
          %s1558 = int_to_ptr.vmem [resolvable:$true] %s1557
          %1563 = dma.vmem_to_hbm [thread:$0]  %s1558, 256, %s5, [#allocation5], 32, 32, 2
        $region72: #{tpu_custom_call.1} parent=39 // pred_fallthru
          _
        // Predicated region
        $region73: #{tpu_custom_call.1} parent=39 // pred_check
          %p1564 = pneg %p150
        $region74: #{tpu_custom_call.1} parent=39 // pred_check_branch
          %1566 = sbr.rel (%p1564) target = $region76
        $region75: #{tpu_custom_call.1} parent=39 // pred_region
          %1567 = dma.done [#allocation5], 256
        $region76: #{tpu_custom_call.1} parent=39 // pred_fallthru
          _
      $region40: #{tpu_custom_call.1} parent=5 // pred_fallthru
        _
      %p1568 = scmp.le.s32.totalorder 2, %s17
      // Predicated region
      $region77: #{tpu_custom_call.1} parent=5 // pred_check
        %p1569 = pneg %p1568
      $region78: #{tpu_custom_call.1} parent=5 // pred_check_branch
        %1571 = sbr.rel (%p1569) target = $region80
      $region79: #{tpu_custom_call.1} parent=5 // pred_region
        %s1572 = ssub.s32 %s17, 2
      $region80: #{tpu_custom_call.1} parent=5 // pred_fallthru
        _
    $region6: #{tpu_custom_call.1} parent=1 // loop_footer
      %s21 = sadd.s32 1, %s17
    $region7: #{tpu_custom_call.1} parent=1 // loop_footer_branch
      %16 = sbr.rel target = $region3
    $region8: #{tpu_custom_call.1} parent=1 // loop_exit
      _
    %1573 = vsyncpa [#allocation4], 1
    %s1574 = scalar_lea.sflag [#allocation4], 1
    %1575 = vsyncpa %s1574, 1
    %1576 = vsyncpa [#allocation7], 1
    %s1577 = scalar_lea.sflag [#allocation7], 1
    %1578 = vsyncpa %s1577, 1
    %1579 = vsyncpa [#allocation10], 1
    %1580 = vsyncpa [#allocation5], 1
    %s1581 = scalar_lea.sflag [#allocation5], 1
    %1582 = vsyncpa %s1581, 1

</llo_original>
